<compile_context>
chip_gen: v7x
topology: tpu7x:2x2x1
jax: 0.10.0
libtpu: 0.0.40
codegen_flags: <defaults>
</compile_context>

<pallas_src>
import jax
import jax.numpy as jnp
from jax import lax
from jax.experimental import pallas as pl
from jax.experimental.pallas import tpu as pltpu

EMBED = 300          # Constants.embedding_size
HIDDEN = 32          # Constants.Lstm.hidden_unit_size
SEQ = 15             # Constants.max_token_length
NCLASS = 2
OUT_PAD = 128        # lane-dense output width (first NCLASS lanes meaningful)


def lstm_kernel(x_ref, wih_ref, whh_ref, b_ref, wlin_ref, blin_ref,
                out_ref, gx_scr):
    """Grid axis = time chunks.

    x_ref:   [chunk_rows, E_pad]  (chunk_rows = (T/CHUNKS) * B, pipelined DMA)
    wih_ref: [E_pad, 4H]          (resident, constant block index)
    whh_ref: [H, 4H]
    b_ref:   [1, 4H]              (b_ih + b_hh folded)
    wlin_ref:[H, OUT_PAD], blin_ref:[1, OUT_PAD]
    out_ref: [B, OUT_PAD]
    gx_scr:  [T*B, 4H] VMEM scratch holding the hoisted input projection.
    """
    i = pl.program_id(0)
    n_chunks = pl.num_programs(0)
    B = out_ref.shape[0]
    H = whh_ref.shape[0]
    chunk_rows = x_ref.shape[0]
    T = gx_scr.shape[0] // B          # static at trace time

    # --- chunked, pipelined input projection (overlaps next chunk's x DMA) ---
    row0 = pl.multiple_of(i * chunk_rows, chunk_rows)
    gx_scr[pl.ds(row0, chunk_rows), :] = (
        jnp.dot(x_ref[...], wih_ref[...], preferred_element_type=jnp.float32)
        + b_ref[...])

    # --- recurrence + final Linear only once, on the last chunk -------------
    @pl.when(i == n_chunks - 1)
    def _():
        # Hoist loop-invariant operands into vregs once.
        whh = whh_ref[...]                              # [H, 4H]
        h0 = jnp.zeros((B, H), jnp.float32)
        c0 = jnp.zeros((B, H), jnp.float32)

        def step(t, carry):
            h, c = carry
            row = pl.multiple_of(t * B, B)
            gates = gx_scr[pl.ds(row, B), :] + jnp.dot(
                h, whh, preferred_element_type=jnp.float32)      # [B, 4H]
            # Two full-vreg EUP passes; slices taken afterwards.
            sig_all = jax.nn.sigmoid(gates)
            tanh_all = jnp.tanh(gates)
            i_g = sig_all[:, 0 * H:1 * H]
            f_g = sig_all[:, 1 * H:2 * H]
            g_g = tanh_all[:, 2 * H:3 * H]
            o_g = sig_all[:, 3 * H:4 * H]
            c_new = f_g * c + i_g * g_g
            h_new = o_g * jnp.tanh(c_new)
            return (h_new, c_new)

        # h/c live in vregs across the fully-unrolled recurrence.
        h_fin, _ = lax.fori_loop(0, T, step, (h0, c0), unroll=True)

        # Final Linear on h at timestep T-1 (== max_token_length - 1).
        out_ref[...] = (jnp.dot(h_fin, wlin_ref[...],
                                preferred_element_type=jnp.float32)
                        + blin_ref[...])


def lstm_model_forward(x_tbe, w_ih, w_hh, b, w_lin, b_lin):
    """x_tbe: [T, B, E] float32; returns [B, NCLASS] presoftmax logits.

    w_ih: [E, 4H], w_hh: [H, 4H], b: [1, 4H] (b_ih + b_hh folded),
    w_lin: [H, NCLASS], b_lin: [1, NCLASS]. Gate order is PyTorch (i,f,g,o).
    """
    T, B, E = x_tbe.shape
    H = w_hh.shape[0]

    # Pad the contraction dim E to a multiple of 128 (zeros -> no-op math).
    E_pad = ((E + 127) // 128) * 128
    if E_pad != E:
        x_tbe = jnp.pad(x_tbe, ((0, 0), (0, 0), (0, E_pad - E)))
        w_ih = jnp.pad(w_ih, ((0, E_pad - E), (0, 0)))

    # Flatten time into rows so each chunk's projection is one matmul.
    x_flat = x_tbe.reshape(T * B, E_pad)

    # Lane-dense output: pad Linear weights/bias to OUT_PAD lanes with zeros.
    w_lin_p = jnp.pad(w_lin, ((0, 0), (0, OUT_PAD - w_lin.shape[1])))
    b_lin_p = jnp.pad(b_lin, ((0, 0), (0, OUT_PAD - b_lin.shape[1])))

    # Time-chunked grid so x DMA double-buffers behind the projection matmul.
    chunks = 3 if (T % 3 == 0 and ((T // 3) * B) % 8 == 0) else 1
    chunk_rows = (T // chunks) * B

    cost = pl.CostEstimate(
        flops=(2 * T * B * E_pad * 4 * H          # input projection
               + T * 2 * B * H * 4 * H            # recurrent matmuls
               + 2 * B * H * OUT_PAD),            # final Linear
        transcendentals=T * (2 * B * 4 * H + B * H),
        bytes_accessed=4 * (T * B * E_pad + E_pad * 4 * H + H * 4 * H
                            + 4 * H + H * OUT_PAD + OUT_PAD + B * OUT_PAD),
    )

    grid_spec = pltpu.PrefetchScalarGridSpec(
        num_scalar_prefetch=0,
        grid=(chunks,),
        in_specs=[
            pl.BlockSpec((chunk_rows, E_pad), lambda i: (i, 0)),   # x chunk
            pl.BlockSpec((E_pad, 4 * H), lambda i: (0, 0)),        # w_ih
            pl.BlockSpec((H, 4 * H), lambda i: (0, 0)),            # w_hh
            pl.BlockSpec((1, 4 * H), lambda i: (0, 0)),            # bias
            pl.BlockSpec((H, OUT_PAD), lambda i: (0, 0)),          # w_lin
            pl.BlockSpec((1, OUT_PAD), lambda i: (0, 0)),          # b_lin
        ],
        out_specs=pl.BlockSpec((B, OUT_PAD), lambda i: (0, 0)),
        scratch_shapes=[
            pltpu.VMEM((T * B, 4 * H), jnp.float32),   # hoisted x-projection
        ],
    )

    out_padded = pl.pallas_call(
        lstm_kernel,
        out_shape=jax.ShapeDtypeStruct((B, OUT_PAD), jnp.float32),
        grid_spec=grid_spec,
        compiler_params=pltpu.CompilerParams(
            dimension_semantics=("arbitrary",)),
        cost_estimate=cost,
    )(x_flat, w_ih, w_hh, b, w_lin_p, b_lin_p)

    return out_padded[:, :NCLASS]


def reference_forward(x_tbe, w_ih, w_hh, b, w_lin, b_lin):
    """Pure-JAX reference of the same computation (for correctness check)."""
    T, B, E = x_tbe.shape
    H = w_hh.shape[0]
    h = jnp.zeros((B, H), jnp.float32)
    c = jnp.zeros((B, H), jnp.float32)

    def step(carry, x_t):
        h, c = carry
        gates = x_t @ w_ih + h @ w_hh + b
        i_g = jax.nn.sigmoid(gates[:, 0 * H:1 * H])
        f_g = jax.nn.sigmoid(gates[:, 1 * H:2 * H])
        g_g = jnp.tanh(gates[:, 2 * H:3 * H])
        o_g = jax.nn.sigmoid(gates[:, 3 * H:4 * H])
        c = f_g * c + i_g * g_g
        h = o_g * jnp.tanh(c)
        return (h, c), None

    (h, _), _ = lax.scan(step, (h, c), x_tbe)
    return h @ w_lin + b_lin


if __name__ == "__main__":
    key = jax.random.PRNGKey(0)
    ks = jax.random.split(key, 8)

    B = 8
    VOCAB = 64

    # Deterministic synthetic "checkpoint" (shapes from the module __init__).
    embedding_table = jax.random.normal(ks[0], (VOCAB, EMBED), jnp.float32) * 0.1
    # PyTorch LSTM params: weight_ih [4H, E], weight_hh [4H, H], biases [4H].
    w_ih_t = jax.random.normal(ks[1], (4 * HIDDEN, EMBED), jnp.float32) * 0.05
    w_hh_t = jax.random.normal(ks[2], (4 * HIDDEN, HIDDEN), jnp.float32) * 0.05
    b_ih = jax.random.normal(ks[3], (4 * HIDDEN,), jnp.float32) * 0.05
    b_hh = jax.random.normal(ks[4], (4 * HIDDEN,), jnp.float32) * 0.05
    # Linear(32, 2): weight [2, 32], bias [2].
    w_lin_t = jax.random.normal(ks[5], (NCLASS, HIDDEN), jnp.float32) * 0.1
    b_lin = jax.random.normal(ks[6], (NCLASS,), jnp.float32) * 0.1

    # Token ids: [B, T].
    token_ids = jax.random.randint(ks[7], (B, SEQ), 0, VOCAB)

    # Glue (plain JAX): embedding lookup + layout transform to time-major.
    x_bte = jnp.take(embedding_table, token_ids, axis=0)     # [B, T, E]
    x_tbe = jnp.transpose(x_bte, (1, 0, 2))                  # [T, B, E]

    # Pre-transpose weights for the kernel; fold biases.
    w_ih = w_ih_t.T                                          # [E, 4H]
    w_hh = w_hh_t.T                                          # [H, 4H]
    b = (b_ih + b_hh).reshape(1, 4 * HIDDEN)                 # [1, 4H]
    w_lin = w_lin_t.T                                        # [H, 2]
    b_lin2 = b_lin.reshape(1, NCLASS)                        # [1, 2]

    out = lstm_model_forward(x_tbe, w_ih, w_hh, b, w_lin, b_lin2)
    out = jax.block_until_ready(out)

    ref = jax.block_until_ready(
        reference_forward(x_tbe, w_ih, w_hh, b, w_lin, b_lin2))
    assert out.shape == (B, NCLASS)
    assert jnp.allclose(out, ref, atol=1e-4, rtol=1e-4), "mismatch vs reference"

    print("KERNEL_OK")
</pallas_src>

<mosaic_0001>
module attributes {stable_mosaic.version = 11 : i64} {
  func.func @lstm_kernel(%arg0: i32, %arg1: memref<40x384xf32, #tpu.memory_space<vmem>>, %arg2: memref<384x128xf32, #tpu.memory_space<vmem>>, %arg3: memref<32x128xf32, #tpu.memory_space<vmem>>, %arg4: memref<1x128xf32, #tpu.memory_space<vmem>>, %arg5: memref<32x128xf32, #tpu.memory_space<vmem>>, %arg6: memref<1x128xf32, #tpu.memory_space<vmem>>, %arg7: memref<8x128xf32, #tpu.memory_space<vmem>>, %arg8: memref<120x128xf32, #tpu.memory_space<vmem>>) attributes {dimension_semantics = [#tpu.dimension_semantics<arbitrary>], iteration_bounds = array<i64: 3>, scalar_prefetch = 0 : i64, scratch_operands = 1 : i64, tpu.core_type = #tpu.core_type<tc>, window_params = [{transform_indices = @transform_0, window_bounds = array<i64: 40, 384>}, {pipeline_mode = #tpu.pipeline_mode<synchronous>, transform_indices = @transform_1, window_bounds = array<i64: 384, 128>}, {pipeline_mode = #tpu.pipeline_mode<synchronous>, transform_indices = @transform_2, window_bounds = array<i64: 32, 128>}, {pipeline_mode = #tpu.pipeline_mode<synchronous>, transform_indices = @transform_3, window_bounds = array<i64: 1, 128>}, {pipeline_mode = #tpu.pipeline_mode<synchronous>, transform_indices = @transform_4, window_bounds = array<i64: 32, 128>}, {pipeline_mode = #tpu.pipeline_mode<synchronous>, transform_indices = @transform_5, window_bounds = array<i64: 1, 128>}, {pipeline_mode = #tpu.pipeline_mode<synchronous>, transform_indices = @transform_6, window_bounds = array<i64: 8, 128>}]} {
    %c40_i32 = arith.constant 40 : i32
    %0 = arith.muli %arg0, %c40_i32 : i32
    %1 = tpu.assume_multiple %0, 40 : i32
    %c0 = arith.constant 0 : index
    %c0_0 = arith.constant 0 : index
    %2 = vector.load %arg1[%c0, %c0_0] : memref<40x384xf32, #tpu.memory_space<vmem>>, vector<40x384xf32>
    %c0_1 = arith.constant 0 : index
    %c0_2 = arith.constant 0 : index
    %3 = vector.load %arg2[%c0_1, %c0_2] : memref<384x128xf32, #tpu.memory_space<vmem>>, vector<384x128xf32>
    %cst = arith.constant dense<0.000000e+00> : vector<40x128xf32>
    %4 = tpu.matmul %2, %3, %cst {dimension_numbers = #tpu.dot_dimension_numbers<[1], [0], [0], [1], [0, 0, 1, 1], [], []>} : vector<40x384xf32>, vector<384x128xf32>, vector<40x128xf32> -> vector<40x128xf32>
    %c0_3 = arith.constant 0 : index
    %c0_4 = arith.constant 0 : index
    %5 = vector.load %arg4[%c0_3, %c0_4] : memref<1x128xf32, #tpu.memory_space<vmem>>, vector<1x128xf32>
    %6 = vector.broadcast %5 : vector<1x128xf32> to vector<40x128xf32>
    %7 = arith.addf %4, %6 : vector<40x128xf32>
    %8 = arith.index_cast %1 : i32 to index
    %c0_5 = arith.constant 0 : index
    %9 = vector.load %arg8[%8, %c0_5] : memref<120x128xf32, #tpu.memory_space<vmem>>, vector<40x128xf32>
    tpu.vector_store %arg8[%8, %c0_5], %7 {strides = array<i32>} : memref<120x128xf32, #tpu.memory_space<vmem>>, vector<40x128xf32>,
    %c2_i32 = arith.constant 2 : i32
    %10 = arith.cmpi eq, %arg0, %c2_i32 : i32
    %11 = arith.extui %10 : i1 to i32
    %c0_i32 = arith.constant 0 : i32
    %12 = arith.cmpi ne, %11, %c0_i32 : i32
    scf.if %12 {
      %c0_6 = arith.constant 0 : index
      %c0_7 = arith.constant 0 : index
      %13 = vector.load %arg3[%c0_6, %c0_7] : memref<32x128xf32, #tpu.memory_space<vmem>>, vector<32x128xf32>
      %cst_8 = arith.constant 0.000000e+00 : f32
      %14 = vector.broadcast %cst_8 : f32 to vector<8x32xf32>
      %cst_9 = arith.constant 0.000000e+00 : f32
      %15 = vector.broadcast %cst_9 : f32 to vector<8x32xf32>
      %c0_i32_10 = arith.constant 0 : i32
      %c8_i32 = arith.constant 8 : i32
      %16 = arith.muli %c0_i32_10, %c8_i32 : i32
      %17 = tpu.assume_multiple %16, 8 : i32
      %18 = arith.index_cast %17 : i32 to index
      %c0_11 = arith.constant 0 : index
      %19 = vector.load %arg8[%18, %c0_11] : memref<120x128xf32, #tpu.memory_space<vmem>>, vector<8x128xf32>
      %cst_12 = arith.constant dense<0.000000e+00> : vector<8x128xf32>
      %20 = tpu.matmul %14, %13, %cst_12 {dimension_numbers = #tpu.dot_dimension_numbers<[1], [0], [0], [1], [0, 0, 1, 1], [], []>} : vector<8x32xf32>, vector<32x128xf32>, vector<8x128xf32> -> vector<8x128xf32>
      %21 = arith.addf %19, %20 : vector<8x128xf32>
      %22 = arith.negf %21 : vector<8x128xf32>
      %23 = math.exp %22 : vector<8x128xf32>
      %cst_13 = arith.constant 1.000000e+00 : f32
      %24 = vector.broadcast %cst_13 : f32 to vector<8x128xf32>
      %25 = arith.addf %24, %23 : vector<8x128xf32>
      %26 = arith.divf %24, %25 : vector<8x128xf32>
      %27 = math.tanh %21 : vector<8x128xf32>
      %28 = vector.extract_strided_slice %26 {offsets = [0, 0], sizes = [8, 32], strides = [1, 1]} : vector<8x128xf32> to vector<8x32xf32>
      %29 = vector.extract_strided_slice %26 {offsets = [0, 32], sizes = [8, 32], strides = [1, 1]} : vector<8x128xf32> to vector<8x32xf32>
      %30 = vector.extract_strided_slice %27 {offsets = [0, 64], sizes = [8, 32], strides = [1, 1]} : vector<8x128xf32> to vector<8x32xf32>
      %31 = vector.extract_strided_slice %26 {offsets = [0, 96], sizes = [8, 32], strides = [1, 1]} : vector<8x128xf32> to vector<8x32xf32>
      %32 = arith.mulf %29, %15 : vector<8x32xf32>
      %33 = arith.mulf %28, %30 : vector<8x32xf32>
      %34 = arith.addf %32, %33 : vector<8x32xf32>
      %35 = math.tanh %34 : vector<8x32xf32>
      %36 = arith.mulf %31, %35 : vector<8x32xf32>
      %c1_i32 = arith.constant 1 : i32
      %c8_i32_14 = arith.constant 8 : i32
      %37 = arith.muli %c1_i32, %c8_i32_14 : i32
      %38 = tpu.assume_multiple %37, 8 : i32
      %39 = arith.index_cast %38 : i32 to index
      %c0_15 = arith.constant 0 : index
      %40 = vector.load %arg8[%39, %c0_15] : memref<120x128xf32, #tpu.memory_space<vmem>>, vector<8x128xf32>
      %cst_16 = arith.constant dense<0.000000e+00> : vector<8x128xf32>
      %41 = tpu.matmul %36, %13, %cst_16 {dimension_numbers = #tpu.dot_dimension_numbers<[1], [0], [0], [1], [0, 0, 1, 1], [], []>} : vector<8x32xf32>, vector<32x128xf32>, vector<8x128xf32> -> vector<8x128xf32>
      %42 = arith.addf %40, %41 : vector<8x128xf32>
      %43 = arith.negf %42 : vector<8x128xf32>
      %44 = math.exp %43 : vector<8x128xf32>
      %cst_17 = arith.constant 1.000000e+00 : f32
      %45 = vector.broadcast %cst_17 : f32 to vector<8x128xf32>
      %46 = arith.addf %45, %44 : vector<8x128xf32>
      %47 = arith.divf %45, %46 : vector<8x128xf32>
      %48 = math.tanh %42 : vector<8x128xf32>
      %49 = vector.extract_strided_slice %47 {offsets = [0, 0], sizes = [8, 32], strides = [1, 1]} : vector<8x128xf32> to vector<8x32xf32>
      %50 = vector.extract_strided_slice %47 {offsets = [0, 32], sizes = [8, 32], strides = [1, 1]} : vector<8x128xf32> to vector<8x32xf32>
      %51 = vector.extract_strided_slice %48 {offsets = [0, 64], sizes = [8, 32], strides = [1, 1]} : vector<8x128xf32> to vector<8x32xf32>
      %52 = vector.extract_strided_slice %47 {offsets = [0, 96], sizes = [8, 32], strides = [1, 1]} : vector<8x128xf32> to vector<8x32xf32>
      %53 = arith.mulf %50, %34 : vector<8x32xf32>
      %54 = arith.mulf %49, %51 : vector<8x32xf32>
      %55 = arith.addf %53, %54 : vector<8x32xf32>
      %56 = math.tanh %55 : vector<8x32xf32>
      %57 = arith.mulf %52, %56 : vector<8x32xf32>
      %c2_i32_18 = arith.constant 2 : i32
      %c8_i32_19 = arith.constant 8 : i32
      %58 = arith.muli %c2_i32_18, %c8_i32_19 : i32
      %59 = tpu.assume_multiple %58, 8 : i32
      %60 = arith.index_cast %59 : i32 to index
      %c0_20 = arith.constant 0 : index
      %61 = vector.load %arg8[%60, %c0_20] : memref<120x128xf32, #tpu.memory_space<vmem>>, vector<8x128xf32>
      %cst_21 = arith.constant dense<0.000000e+00> : vector<8x128xf32>
      %62 = tpu.matmul %57, %13, %cst_21 {dimension_numbers = #tpu.dot_dimension_numbers<[1], [0], [0], [1], [0, 0, 1, 1], [], []>} : vector<8x32xf32>, vector<32x128xf32>, vector<8x128xf32> -> vector<8x128xf32>
      %63 = arith.addf %61, %62 : vector<8x128xf32>
      %64 = arith.negf %63 : vector<8x128xf32>
      %65 = math.exp %64 : vector<8x128xf32>
      %cst_22 = arith.constant 1.000000e+00 : f32
      %66 = vector.broadcast %cst_22 : f32 to vector<8x128xf32>
      %67 = arith.addf %66, %65 : vector<8x128xf32>
      %68 = arith.divf %66, %67 : vector<8x128xf32>
      %69 = math.tanh %63 : vector<8x128xf32>
      %70 = vector.extract_strided_slice %68 {offsets = [0, 0], sizes = [8, 32], strides = [1, 1]} : vector<8x128xf32> to vector<8x32xf32>
      %71 = vector.extract_strided_slice %68 {offsets = [0, 32], sizes = [8, 32], strides = [1, 1]} : vector<8x128xf32> to vector<8x32xf32>
      %72 = vector.extract_strided_slice %69 {offsets = [0, 64], sizes = [8, 32], strides = [1, 1]} : vector<8x128xf32> to vector<8x32xf32>
      %73 = vector.extract_strided_slice %68 {offsets = [0, 96], sizes = [8, 32], strides = [1, 1]} : vector<8x128xf32> to vector<8x32xf32>
      %74 = arith.mulf %71, %55 : vector<8x32xf32>
      %75 = arith.mulf %70, %72 : vector<8x32xf32>
      %76 = arith.addf %74, %75 : vector<8x32xf32>
      %77 = math.tanh %76 : vector<8x32xf32>
      %78 = arith.mulf %73, %77 : vector<8x32xf32>
      %c3_i32 = arith.constant 3 : i32
      %c8_i32_23 = arith.constant 8 : i32
      %79 = arith.muli %c3_i32, %c8_i32_23 : i32
      %80 = tpu.assume_multiple %79, 8 : i32
      %81 = arith.index_cast %80 : i32 to index
      %c0_24 = arith.constant 0 : index
      %82 = vector.load %arg8[%81, %c0_24] : memref<120x128xf32, #tpu.memory_space<vmem>>, vector<8x128xf32>
      %cst_25 = arith.constant dense<0.000000e+00> : vector<8x128xf32>
      %83 = tpu.matmul %78, %13, %cst_25 {dimension_numbers = #tpu.dot_dimension_numbers<[1], [0], [0], [1], [0, 0, 1, 1], [], []>} : vector<8x32xf32>, vector<32x128xf32>, vector<8x128xf32> -> vector<8x128xf32>
      %84 = arith.addf %82, %83 : vector<8x128xf32>
      %85 = arith.negf %84 : vector<8x128xf32>
      %86 = math.exp %85 : vector<8x128xf32>
      %cst_26 = arith.constant 1.000000e+00 : f32
      %87 = vector.broadcast %cst_26 : f32 to vector<8x128xf32>
      %88 = arith.addf %87, %86 : vector<8x128xf32>
      %89 = arith.divf %87, %88 : vector<8x128xf32>
      %90 = math.tanh %84 : vector<8x128xf32>
      %91 = vector.extract_strided_slice %89 {offsets = [0, 0], sizes = [8, 32], strides = [1, 1]} : vector<8x128xf32> to vector<8x32xf32>
      %92 = vector.extract_strided_slice %89 {offsets = [0, 32], sizes = [8, 32], strides = [1, 1]} : vector<8x128xf32> to vector<8x32xf32>
      %93 = vector.extract_strided_slice %90 {offsets = [0, 64], sizes = [8, 32], strides = [1, 1]} : vector<8x128xf32> to vector<8x32xf32>
      %94 = vector.extract_strided_slice %89 {offsets = [0, 96], sizes = [8, 32], strides = [1, 1]} : vector<8x128xf32> to vector<8x32xf32>
      %95 = arith.mulf %92, %76 : vector<8x32xf32>
      %96 = arith.mulf %91, %93 : vector<8x32xf32>
      %97 = arith.addf %95, %96 : vector<8x32xf32>
      %98 = math.tanh %97 : vector<8x32xf32>
      %99 = arith.mulf %94, %98 : vector<8x32xf32>
      %c4_i32 = arith.constant 4 : i32
      %c8_i32_27 = arith.constant 8 : i32
      %100 = arith.muli %c4_i32, %c8_i32_27 : i32
      %101 = tpu.assume_multiple %100, 8 : i32
      %102 = arith.index_cast %101 : i32 to index
      %c0_28 = arith.constant 0 : index
      %103 = vector.load %arg8[%102, %c0_28] : memref<120x128xf32, #tpu.memory_space<vmem>>, vector<8x128xf32>
      %cst_29 = arith.constant dense<0.000000e+00> : vector<8x128xf32>
      %104 = tpu.matmul %99, %13, %cst_29 {dimension_numbers = #tpu.dot_dimension_numbers<[1], [0], [0], [1], [0, 0, 1, 1], [], []>} : vector<8x32xf32>, vector<32x128xf32>, vector<8x128xf32> -> vector<8x128xf32>
      %105 = arith.addf %103, %104 : vector<8x128xf32>
      %106 = arith.negf %105 : vector<8x128xf32>
      %107 = math.exp %106 : vector<8x128xf32>
      %cst_30 = arith.constant 1.000000e+00 : f32
      %108 = vector.broadcast %cst_30 : f32 to vector<8x128xf32>
      %109 = arith.addf %108, %107 : vector<8x128xf32>
      %110 = arith.divf %108, %109 : vector<8x128xf32>
      %111 = math.tanh %105 : vector<8x128xf32>
      %112 = vector.extract_strided_slice %110 {offsets = [0, 0], sizes = [8, 32], strides = [1, 1]} : vector<8x128xf32> to vector<8x32xf32>
      %113 = vector.extract_strided_slice %110 {offsets = [0, 32], sizes = [8, 32], strides = [1, 1]} : vector<8x128xf32> to vector<8x32xf32>
      %114 = vector.extract_strided_slice %111 {offsets = [0, 64], sizes = [8, 32], strides = [1, 1]} : vector<8x128xf32> to vector<8x32xf32>
      %115 = vector.extract_strided_slice %110 {offsets = [0, 96], sizes = [8, 32], strides = [1, 1]} : vector<8x128xf32> to vector<8x32xf32>
      %116 = arith.mulf %113, %97 : vector<8x32xf32>
      %117 = arith.mulf %112, %114 : vector<8x32xf32>
      %118 = arith.addf %116, %117 : vector<8x32xf32>
      %119 = math.tanh %118 : vector<8x32xf32>
      %120 = arith.mulf %115, %119 : vector<8x32xf32>
      %c5_i32 = arith.constant 5 : i32
      %c8_i32_31 = arith.constant 8 : i32
      %121 = arith.muli %c5_i32, %c8_i32_31 : i32
      %122 = tpu.assume_multiple %121, 8 : i32
      %123 = arith.index_cast %122 : i32 to index
      %c0_32 = arith.constant 0 : index
      %124 = vector.load %arg8[%123, %c0_32] : memref<120x128xf32, #tpu.memory_space<vmem>>, vector<8x128xf32>
      %cst_33 = arith.constant dense<0.000000e+00> : vector<8x128xf32>
      %125 = tpu.matmul %120, %13, %cst_33 {dimension_numbers = #tpu.dot_dimension_numbers<[1], [0], [0], [1], [0, 0, 1, 1], [], []>} : vector<8x32xf32>, vector<32x128xf32>, vector<8x128xf32> -> vector<8x128xf32>
      %126 = arith.addf %124, %125 : vector<8x128xf32>
      %127 = arith.negf %126 : vector<8x128xf32>
      %128 = math.exp %127 : vector<8x128xf32>
      %cst_34 = arith.constant 1.000000e+00 : f32
      %129 = vector.broadcast %cst_34 : f32 to vector<8x128xf32>
      %130 = arith.addf %129, %128 : vector<8x128xf32>
      %131 = arith.divf %129, %130 : vector<8x128xf32>
      %132 = math.tanh %126 : vector<8x128xf32>
      %133 = vector.extract_strided_slice %131 {offsets = [0, 0], sizes = [8, 32], strides = [1, 1]} : vector<8x128xf32> to vector<8x32xf32>
      %134 = vector.extract_strided_slice %131 {offsets = [0, 32], sizes = [8, 32], strides = [1, 1]} : vector<8x128xf32> to vector<8x32xf32>
      %135 = vector.extract_strided_slice %132 {offsets = [0, 64], sizes = [8, 32], strides = [1, 1]} : vector<8x128xf32> to vector<8x32xf32>
      %136 = vector.extract_strided_slice %131 {offsets = [0, 96], sizes = [8, 32], strides = [1, 1]} : vector<8x128xf32> to vector<8x32xf32>
      %137 = arith.mulf %134, %118 : vector<8x32xf32>
      %138 = arith.mulf %133, %135 : vector<8x32xf32>
      %139 = arith.addf %137, %138 : vector<8x32xf32>
      %140 = math.tanh %139 : vector<8x32xf32>
      %141 = arith.mulf %136, %140 : vector<8x32xf32>
      %c6_i32 = arith.constant 6 : i32
      %c8_i32_35 = arith.constant 8 : i32
      %142 = arith.muli %c6_i32, %c8_i32_35 : i32
      %143 = tpu.assume_multiple %142, 8 : i32
      %144 = arith.index_cast %143 : i32 to index
      %c0_36 = arith.constant 0 : index
      %145 = vector.load %arg8[%144, %c0_36] : memref<120x128xf32, #tpu.memory_space<vmem>>, vector<8x128xf32>
      %cst_37 = arith.constant dense<0.000000e+00> : vector<8x128xf32>
      %146 = tpu.matmul %141, %13, %cst_37 {dimension_numbers = #tpu.dot_dimension_numbers<[1], [0], [0], [1], [0, 0, 1, 1], [], []>} : vector<8x32xf32>, vector<32x128xf32>, vector<8x128xf32> -> vector<8x128xf32>
      %147 = arith.addf %145, %146 : vector<8x128xf32>
      %148 = arith.negf %147 : vector<8x128xf32>
      %149 = math.exp %148 : vector<8x128xf32>
      %cst_38 = arith.constant 1.000000e+00 : f32
      %150 = vector.broadcast %cst_38 : f32 to vector<8x128xf32>
      %151 = arith.addf %150, %149 : vector<8x128xf32>
      %152 = arith.divf %150, %151 : vector<8x128xf32>
      %153 = math.tanh %147 : vector<8x128xf32>
      %154 = vector.extract_strided_slice %152 {offsets = [0, 0], sizes = [8, 32], strides = [1, 1]} : vector<8x128xf32> to vector<8x32xf32>
      %155 = vector.extract_strided_slice %152 {offsets = [0, 32], sizes = [8, 32], strides = [1, 1]} : vector<8x128xf32> to vector<8x32xf32>
      %156 = vector.extract_strided_slice %153 {offsets = [0, 64], sizes = [8, 32], strides = [1, 1]} : vector<8x128xf32> to vector<8x32xf32>
      %157 = vector.extract_strided_slice %152 {offsets = [0, 96], sizes = [8, 32], strides = [1, 1]} : vector<8x128xf32> to vector<8x32xf32>
      %158 = arith.mulf %155, %139 : vector<8x32xf32>
      %159 = arith.mulf %154, %156 : vector<8x32xf32>
      %160 = arith.addf %158, %159 : vector<8x32xf32>
      %161 = math.tanh %160 : vector<8x32xf32>
      %162 = arith.mulf %157, %161 : vector<8x32xf32>
      %c7_i32 = arith.constant 7 : i32
      %c8_i32_39 = arith.constant 8 : i32
      %163 = arith.muli %c7_i32, %c8_i32_39 : i32
      %164 = tpu.assume_multiple %163, 8 : i32
      %165 = arith.index_cast %164 : i32 to index
      %c0_40 = arith.constant 0 : index
      %166 = vector.load %arg8[%165, %c0_40] : memref<120x128xf32, #tpu.memory_space<vmem>>, vector<8x128xf32>
      %cst_41 = arith.constant dense<0.000000e+00> : vector<8x128xf32>
      %167 = tpu.matmul %162, %13, %cst_41 {dimension_numbers = #tpu.dot_dimension_numbers<[1], [0], [0], [1], [0, 0, 1, 1], [], []>} : vector<8x32xf32>, vector<32x128xf32>, vector<8x128xf32> -> vector<8x128xf32>
      %168 = arith.addf %166, %167 : vector<8x128xf32>
      %169 = arith.negf %168 : vector<8x128xf32>
      %170 = math.exp %169 : vector<8x128xf32>
      %cst_42 = arith.constant 1.000000e+00 : f32
      %171 = vector.broadcast %cst_42 : f32 to vector<8x128xf32>
      %172 = arith.addf %171, %170 : vector<8x128xf32>
      %173 = arith.divf %171, %172 : vector<8x128xf32>
      %174 = math.tanh %168 : vector<8x128xf32>
      %175 = vector.extract_strided_slice %173 {offsets = [0, 0], sizes = [8, 32], strides = [1, 1]} : vector<8x128xf32> to vector<8x32xf32>
      %176 = vector.extract_strided_slice %173 {offsets = [0, 32], sizes = [8, 32], strides = [1, 1]} : vector<8x128xf32> to vector<8x32xf32>
      %177 = vector.extract_strided_slice %174 {offsets = [0, 64], sizes = [8, 32], strides = [1, 1]} : vector<8x128xf32> to vector<8x32xf32>
      %178 = vector.extract_strided_slice %173 {offsets = [0, 96], sizes = [8, 32], strides = [1, 1]} : vector<8x128xf32> to vector<8x32xf32>
      %179 = arith.mulf %176, %160 : vector<8x32xf32>
      %180 = arith.mulf %175, %177 : vector<8x32xf32>
      %181 = arith.addf %179, %180 : vector<8x32xf32>
      %182 = math.tanh %181 : vector<8x32xf32>
      %183 = arith.mulf %178, %182 : vector<8x32xf32>
      %c8_i32_43 = arith.constant 8 : i32
      %c8_i32_44 = arith.constant 8 : i32
      %184 = arith.muli %c8_i32_43, %c8_i32_44 : i32
      %185 = tpu.assume_multiple %184, 8 : i32
      %186 = arith.index_cast %185 : i32 to index
      %c0_45 = arith.constant 0 : index
      %187 = vector.load %arg8[%186, %c0_45] : memref<120x128xf32, #tpu.memory_space<vmem>>, vector<8x128xf32>
      %cst_46 = arith.constant dense<0.000000e+00> : vector<8x128xf32>
      %188 = tpu.matmul %183, %13, %cst_46 {dimension_numbers = #tpu.dot_dimension_numbers<[1], [0], [0], [1], [0, 0, 1, 1], [], []>} : vector<8x32xf32>, vector<32x128xf32>, vector<8x128xf32> -> vector<8x128xf32>
      %189 = arith.addf %187, %188 : vector<8x128xf32>
      %190 = arith.negf %189 : vector<8x128xf32>
      %191 = math.exp %190 : vector<8x128xf32>
      %cst_47 = arith.constant 1.000000e+00 : f32
      %192 = vector.broadcast %cst_47 : f32 to vector<8x128xf32>
      %193 = arith.addf %192, %191 : vector<8x128xf32>
      %194 = arith.divf %192, %193 : vector<8x128xf32>
      %195 = math.tanh %189 : vector<8x128xf32>
      %196 = vector.extract_strided_slice %194 {offsets = [0, 0], sizes = [8, 32], strides = [1, 1]} : vector<8x128xf32> to vector<8x32xf32>
      %197 = vector.extract_strided_slice %194 {offsets = [0, 32], sizes = [8, 32], strides = [1, 1]} : vector<8x128xf32> to vector<8x32xf32>
      %198 = vector.extract_strided_slice %195 {offsets = [0, 64], sizes = [8, 32], strides = [1, 1]} : vector<8x128xf32> to vector<8x32xf32>
      %199 = vector.extract_strided_slice %194 {offsets = [0, 96], sizes = [8, 32], strides = [1, 1]} : vector<8x128xf32> to vector<8x32xf32>
      %200 = arith.mulf %197, %181 : vector<8x32xf32>
      %201 = arith.mulf %196, %198 : vector<8x32xf32>
      %202 = arith.addf %200, %201 : vector<8x32xf32>
      %203 = math.tanh %202 : vector<8x32xf32>
      %204 = arith.mulf %199, %203 : vector<8x32xf32>
      %c9_i32 = arith.constant 9 : i32
      %c8_i32_48 = arith.constant 8 : i32
      %205 = arith.muli %c9_i32, %c8_i32_48 : i32
      %206 = tpu.assume_multiple %205, 8 : i32
      %207 = arith.index_cast %206 : i32 to index
      %c0_49 = arith.constant 0 : index
      %208 = vector.load %arg8[%207, %c0_49] : memref<120x128xf32, #tpu.memory_space<vmem>>, vector<8x128xf32>
      %cst_50 = arith.constant dense<0.000000e+00> : vector<8x128xf32>
      %209 = tpu.matmul %204, %13, %cst_50 {dimension_numbers = #tpu.dot_dimension_numbers<[1], [0], [0], [1], [0, 0, 1, 1], [], []>} : vector<8x32xf32>, vector<32x128xf32>, vector<8x128xf32> -> vector<8x128xf32>
      %210 = arith.addf %208, %209 : vector<8x128xf32>
      %211 = arith.negf %210 : vector<8x128xf32>
      %212 = math.exp %211 : vector<8x128xf32>
      %cst_51 = arith.constant 1.000000e+00 : f32
      %213 = vector.broadcast %cst_51 : f32 to vector<8x128xf32>
      %214 = arith.addf %213, %212 : vector<8x128xf32>
      %215 = arith.divf %213, %214 : vector<8x128xf32>
      %216 = math.tanh %210 : vector<8x128xf32>
      %217 = vector.extract_strided_slice %215 {offsets = [0, 0], sizes = [8, 32], strides = [1, 1]} : vector<8x128xf32> to vector<8x32xf32>
      %218 = vector.extract_strided_slice %215 {offsets = [0, 32], sizes = [8, 32], strides = [1, 1]} : vector<8x128xf32> to vector<8x32xf32>
      %219 = vector.extract_strided_slice %216 {offsets = [0, 64], sizes = [8, 32], strides = [1, 1]} : vector<8x128xf32> to vector<8x32xf32>
      %220 = vector.extract_strided_slice %215 {offsets = [0, 96], sizes = [8, 32], strides = [1, 1]} : vector<8x128xf32> to vector<8x32xf32>
      %221 = arith.mulf %218, %202 : vector<8x32xf32>
      %222 = arith.mulf %217, %219 : vector<8x32xf32>
      %223 = arith.addf %221, %222 : vector<8x32xf32>
      %224 = math.tanh %223 : vector<8x32xf32>
      %225 = arith.mulf %220, %224 : vector<8x32xf32>
      %c10_i32 = arith.constant 10 : i32
      %c8_i32_52 = arith.constant 8 : i32
      %226 = arith.muli %c10_i32, %c8_i32_52 : i32
      %227 = tpu.assume_multiple %226, 8 : i32
      %228 = arith.index_cast %227 : i32 to index
      %c0_53 = arith.constant 0 : index
      %229 = vector.load %arg8[%228, %c0_53] : memref<120x128xf32, #tpu.memory_space<vmem>>, vector<8x128xf32>
      %cst_54 = arith.constant dense<0.000000e+00> : vector<8x128xf32>
      %230 = tpu.matmul %225, %13, %cst_54 {dimension_numbers = #tpu.dot_dimension_numbers<[1], [0], [0], [1], [0, 0, 1, 1], [], []>} : vector<8x32xf32>, vector<32x128xf32>, vector<8x128xf32> -> vector<8x128xf32>
      %231 = arith.addf %229, %230 : vector<8x128xf32>
      %232 = arith.negf %231 : vector<8x128xf32>
      %233 = math.exp %232 : vector<8x128xf32>
      %cst_55 = arith.constant 1.000000e+00 : f32
      %234 = vector.broadcast %cst_55 : f32 to vector<8x128xf32>
      %235 = arith.addf %234, %233 : vector<8x128xf32>
      %236 = arith.divf %234, %235 : vector<8x128xf32>
      %237 = math.tanh %231 : vector<8x128xf32>
      %238 = vector.extract_strided_slice %236 {offsets = [0, 0], sizes = [8, 32], strides = [1, 1]} : vector<8x128xf32> to vector<8x32xf32>
      %239 = vector.extract_strided_slice %236 {offsets = [0, 32], sizes = [8, 32], strides = [1, 1]} : vector<8x128xf32> to vector<8x32xf32>
      %240 = vector.extract_strided_slice %237 {offsets = [0, 64], sizes = [8, 32], strides = [1, 1]} : vector<8x128xf32> to vector<8x32xf32>
      %241 = vector.extract_strided_slice %236 {offsets = [0, 96], sizes = [8, 32], strides = [1, 1]} : vector<8x128xf32> to vector<8x32xf32>
      %242 = arith.mulf %239, %223 : vector<8x32xf32>
      %243 = arith.mulf %238, %240 : vector<8x32xf32>
      %244 = arith.addf %242, %243 : vector<8x32xf32>
      %245 = math.tanh %244 : vector<8x32xf32>
      %246 = arith.mulf %241, %245 : vector<8x32xf32>
      %c11_i32 = arith.constant 11 : i32
      %c8_i32_56 = arith.constant 8 : i32
      %247 = arith.muli %c11_i32, %c8_i32_56 : i32
      %248 = tpu.assume_multiple %247, 8 : i32
      %249 = arith.index_cast %248 : i32 to index
      %c0_57 = arith.constant 0 : index
      %250 = vector.load %arg8[%249, %c0_57] : memref<120x128xf32, #tpu.memory_space<vmem>>, vector<8x128xf32>
      %cst_58 = arith.constant dense<0.000000e+00> : vector<8x128xf32>
      %251 = tpu.matmul %246, %13, %cst_58 {dimension_numbers = #tpu.dot_dimension_numbers<[1], [0], [0], [1], [0, 0, 1, 1], [], []>} : vector<8x32xf32>, vector<32x128xf32>, vector<8x128xf32> -> vector<8x128xf32>
      %252 = arith.addf %250, %251 : vector<8x128xf32>
      %253 = arith.negf %252 : vector<8x128xf32>
      %254 = math.exp %253 : vector<8x128xf32>
      %cst_59 = arith.constant 1.000000e+00 : f32
      %255 = vector.broadcast %cst_59 : f32 to vector<8x128xf32>
      %256 = arith.addf %255, %254 : vector<8x128xf32>
      %257 = arith.divf %255, %256 : vector<8x128xf32>
      %258 = math.tanh %252 : vector<8x128xf32>
      %259 = vector.extract_strided_slice %257 {offsets = [0, 0], sizes = [8, 32], strides = [1, 1]} : vector<8x128xf32> to vector<8x32xf32>
      %260 = vector.extract_strided_slice %257 {offsets = [0, 32], sizes = [8, 32], strides = [1, 1]} : vector<8x128xf32> to vector<8x32xf32>
      %261 = vector.extract_strided_slice %258 {offsets = [0, 64], sizes = [8, 32], strides = [1, 1]} : vector<8x128xf32> to vector<8x32xf32>
      %262 = vector.extract_strided_slice %257 {offsets = [0, 96], sizes = [8, 32], strides = [1, 1]} : vector<8x128xf32> to vector<8x32xf32>
      %263 = arith.mulf %260, %244 : vector<8x32xf32>
      %264 = arith.mulf %259, %261 : vector<8x32xf32>
      %265 = arith.addf %263, %264 : vector<8x32xf32>
      %266 = math.tanh %265 : vector<8x32xf32>
      %267 = arith.mulf %262, %266 : vector<8x32xf32>
      %c12_i32 = arith.constant 12 : i32
      %c8_i32_60 = arith.constant 8 : i32
      %268 = arith.muli %c12_i32, %c8_i32_60 : i32
      %269 = tpu.assume_multiple %268, 8 : i32
      %270 = arith.index_cast %269 : i32 to index
      %c0_61 = arith.constant 0 : index
      %271 = vector.load %arg8[%270, %c0_61] : memref<120x128xf32, #tpu.memory_space<vmem>>, vector<8x128xf32>
      %cst_62 = arith.constant dense<0.000000e+00> : vector<8x128xf32>
      %272 = tpu.matmul %267, %13, %cst_62 {dimension_numbers = #tpu.dot_dimension_numbers<[1], [0], [0], [1], [0, 0, 1, 1], [], []>} : vector<8x32xf32>, vector<32x128xf32>, vector<8x128xf32> -> vector<8x128xf32>
      %273 = arith.addf %271, %272 : vector<8x128xf32>
      %274 = arith.negf %273 : vector<8x128xf32>
      %275 = math.exp %274 : vector<8x128xf32>
      %cst_63 = arith.constant 1.000000e+00 : f32
      %276 = vector.broadcast %cst_63 : f32 to vector<8x128xf32>
      %277 = arith.addf %276, %275 : vector<8x128xf32>
      %278 = arith.divf %276, %277 : vector<8x128xf32>
      %279 = math.tanh %273 : vector<8x128xf32>
      %280 = vector.extract_strided_slice %278 {offsets = [0, 0], sizes = [8, 32], strides = [1, 1]} : vector<8x128xf32> to vector<8x32xf32>
      %281 = vector.extract_strided_slice %278 {offsets = [0, 32], sizes = [8, 32], strides = [1, 1]} : vector<8x128xf32> to vector<8x32xf32>
      %282 = vector.extract_strided_slice %279 {offsets = [0, 64], sizes = [8, 32], strides = [1, 1]} : vector<8x128xf32> to vector<8x32xf32>
      %283 = vector.extract_strided_slice %278 {offsets = [0, 96], sizes = [8, 32], strides = [1, 1]} : vector<8x128xf32> to vector<8x32xf32>
      %284 = arith.mulf %281, %265 : vector<8x32xf32>
      %285 = arith.mulf %280, %282 : vector<8x32xf32>
      %286 = arith.addf %284, %285 : vector<8x32xf32>
      %287 = math.tanh %286 : vector<8x32xf32>
      %288 = arith.mulf %283, %287 : vector<8x32xf32>
      %c13_i32 = arith.constant 13 : i32
      %c8_i32_64 = arith.constant 8 : i32
      %289 = arith.muli %c13_i32, %c8_i32_64 : i32
      %290 = tpu.assume_multiple %289, 8 : i32
      %291 = arith.index_cast %290 : i32 to index
      %c0_65 = arith.constant 0 : index
      %292 = vector.load %arg8[%291, %c0_65] : memref<120x128xf32, #tpu.memory_space<vmem>>, vector<8x128xf32>
      %cst_66 = arith.constant dense<0.000000e+00> : vector<8x128xf32>
      %293 = tpu.matmul %288, %13, %cst_66 {dimension_numbers = #tpu.dot_dimension_numbers<[1], [0], [0], [1], [0, 0, 1, 1], [], []>} : vector<8x32xf32>, vector<32x128xf32>, vector<8x128xf32> -> vector<8x128xf32>
      %294 = arith.addf %292, %293 : vector<8x128xf32>
      %295 = arith.negf %294 : vector<8x128xf32>
      %296 = math.exp %295 : vector<8x128xf32>
      %cst_67 = arith.constant 1.000000e+00 : f32
      %297 = vector.broadcast %cst_67 : f32 to vector<8x128xf32>
      %298 = arith.addf %297, %296 : vector<8x128xf32>
      %299 = arith.divf %297, %298 : vector<8x128xf32>
      %300 = math.tanh %294 : vector<8x128xf32>
      %301 = vector.extract_strided_slice %299 {offsets = [0, 0], sizes = [8, 32], strides = [1, 1]} : vector<8x128xf32> to vector<8x32xf32>
      %302 = vector.extract_strided_slice %299 {offsets = [0, 32], sizes = [8, 32], strides = [1, 1]} : vector<8x128xf32> to vector<8x32xf32>
      %303 = vector.extract_strided_slice %300 {offsets = [0, 64], sizes = [8, 32], strides = [1, 1]} : vector<8x128xf32> to vector<8x32xf32>
      %304 = vector.extract_strided_slice %299 {offsets = [0, 96], sizes = [8, 32], strides = [1, 1]} : vector<8x128xf32> to vector<8x32xf32>
      %305 = arith.mulf %302, %286 : vector<8x32xf32>
      %306 = arith.mulf %301, %303 : vector<8x32xf32>
      %307 = arith.addf %305, %306 : vector<8x32xf32>
      %308 = math.tanh %307 : vector<8x32xf32>
      %309 = arith.mulf %304, %308 : vector<8x32xf32>
      %c14_i32 = arith.constant 14 : i32
      %c8_i32_68 = arith.constant 8 : i32
      %310 = arith.muli %c14_i32, %c8_i32_68 : i32
      %311 = tpu.assume_multiple %310, 8 : i32
      %312 = arith.index_cast %311 : i32 to index
      %c0_69 = arith.constant 0 : index
      %313 = vector.load %arg8[%312, %c0_69] : memref<120x128xf32, #tpu.memory_space<vmem>>, vector<8x128xf32>
      %cst_70 = arith.constant dense<0.000000e+00> : vector<8x128xf32>
      %314 = tpu.matmul %309, %13, %cst_70 {dimension_numbers = #tpu.dot_dimension_numbers<[1], [0], [0], [1], [0, 0, 1, 1], [], []>} : vector<8x32xf32>, vector<32x128xf32>, vector<8x128xf32> -> vector<8x128xf32>
      %315 = arith.addf %313, %314 : vector<8x128xf32>
      %316 = arith.negf %315 : vector<8x128xf32>
      %317 = math.exp %316 : vector<8x128xf32>
      %cst_71 = arith.constant 1.000000e+00 : f32
      %318 = vector.broadcast %cst_71 : f32 to vector<8x128xf32>
      %319 = arith.addf %318, %317 : vector<8x128xf32>
      %320 = arith.divf %318, %319 : vector<8x128xf32>
      %321 = math.tanh %315 : vector<8x128xf32>
      %322 = vector.extract_strided_slice %320 {offsets = [0, 0], sizes = [8, 32], strides = [1, 1]} : vector<8x128xf32> to vector<8x32xf32>
      %323 = vector.extract_strided_slice %320 {offsets = [0, 32], sizes = [8, 32], strides = [1, 1]} : vector<8x128xf32> to vector<8x32xf32>
      %324 = vector.extract_strided_slice %321 {offsets = [0, 64], sizes = [8, 32], strides = [1, 1]} : vector<8x128xf32> to vector<8x32xf32>
      %325 = vector.extract_strided_slice %320 {offsets = [0, 96], sizes = [8, 32], strides = [1, 1]} : vector<8x128xf32> to vector<8x32xf32>
      %326 = arith.mulf %323, %307 : vector<8x32xf32>
      %327 = arith.mulf %322, %324 : vector<8x32xf32>
      %328 = arith.addf %326, %327 : vector<8x32xf32>
      %329 = math.tanh %328 : vector<8x32xf32>
      %330 = arith.mulf %325, %329 : vector<8x32xf32>
      %c15_i32 = arith.constant 15 : i32
      %c0_72 = arith.constant 0 : index
      %c0_73 = arith.constant 0 : index
      %331 = vector.load %arg5[%c0_72, %c0_73] : memref<32x128xf32, #tpu.memory_space<vmem>>, vector<32x128xf32>
      %cst_74 = arith.constant dense<0.000000e+00> : vector<8x128xf32>
      %332 = tpu.matmul %330, %331, %cst_74 {dimension_numbers = #tpu.dot_dimension_numbers<[1], [0], [0], [1], [0, 0, 1, 1], [], []>} : vector<8x32xf32>, vector<32x128xf32>, vector<8x128xf32> -> vector<8x128xf32>
      %c0_75 = arith.constant 0 : index
      %c0_76 = arith.constant 0 : index
      %333 = vector.load %arg6[%c0_75, %c0_76] : memref<1x128xf32, #tpu.memory_space<vmem>>, vector<1x128xf32>
      %334 = vector.broadcast %333 : vector<1x128xf32> to vector<8x128xf32>
      %335 = arith.addf %332, %334 : vector<8x128xf32>
      %c0_77 = arith.constant 0 : index
      %c0_78 = arith.constant 0 : index
      %336 = vector.load %arg7[%c0_77, %c0_78] : memref<8x128xf32, #tpu.memory_space<vmem>>, vector<8x128xf32>
      tpu.vector_store %arg7[%c0_77, %c0_78], %335 {strides = array<i32>} : memref<8x128xf32, #tpu.memory_space<vmem>>, vector<8x128xf32>,
    } else {
    }
    return
  }
  func.func @transform_0(%arg0: i32) -> (i32, i32) {
    %c0_i32 = arith.constant 0 : i32
    %c0_i32_0 = arith.constant 0 : i32
    return %arg0, %c0_i32 : i32, i32
  }
  func.func @transform_1(%arg0: i32) -> (i32, i32) {
    %c0_i32 = arith.constant 0 : i32
    %c0_i32_0 = arith.constant 0 : i32
    %c0_i32_1 = arith.constant 0 : i32
    return %c0_i32, %c0_i32_0 : i32, i32
  }
  func.func @transform_2(%arg0: i32) -> (i32, i32) {
    %c0_i32 = arith.constant 0 : i32
    %c0_i32_0 = arith.constant 0 : i32
    %c0_i32_1 = arith.constant 0 : i32
    return %c0_i32, %c0_i32_0 : i32, i32
  }
  func.func @transform_3(%arg0: i32) -> (i32, i32) {
    %c0_i32 = arith.constant 0 : i32
    %c0_i32_0 = arith.constant 0 : i32
    %c0_i32_1 = arith.constant 0 : i32
    return %c0_i32, %c0_i32_0 : i32, i32
  }
  func.func @transform_4(%arg0: i32) -> (i32, i32) {
    %c0_i32 = arith.constant 0 : i32
    %c0_i32_0 = arith.constant 0 : i32
    %c0_i32_1 = arith.constant 0 : i32
    return %c0_i32, %c0_i32_0 : i32, i32
  }
  func.func @transform_5(%arg0: i32) -> (i32, i32) {
    %c0_i32 = arith.constant 0 : i32
    %c0_i32_0 = arith.constant 0 : i32
    %c0_i32_1 = arith.constant 0 : i32
    return %c0_i32, %c0_i32_0 : i32, i32
  }
  func.func @transform_6(%arg0: i32) -> (i32, i32) {
    %c0_i32 = arith.constant 0 : i32
    %c0_i32_0 = arith.constant 0 : i32
    %c0_i32_1 = arith.constant 0 : i32
    return %c0_i32, %c0_i32_0 : i32, i32
  }
}

</mosaic_0001>

<llo_original>
// kernel: tpu_custom_call.1
$region0: #{tpu_custom_call.1}
  #allocation0 [shape = 'u32[]', space=smem, size = 0x4, offset = 0x4, fixed_abs, tag = 'smem constant byte address 0x4 - core index']
  #allocation1 [shape = 'u32[144,128]{1,0:T(1,128)}', space=vmem, size = 0x12000, scoped, tag = 'internal scratch']
  #allocation2 [shape = 'f32[120,128]{1,0:T(8,128)}', space=vmem, size = 0xf000, scoped, tag = 'scratch operand']
  %s0 = inlined_call_operand.hbm [shape: f32[120,384], index: 0, kind: input, shape index: {}]
  %s1 = inlined_call_operand.hbm [shape: f32[384,128], index: 1, kind: input, shape index: {}]
  %s2 = inlined_call_operand.hbm [shape: f32[32,128], index: 2, kind: input, shape index: {}]
  %s3 = inlined_call_operand.vmem [shape: f32[1,128], index: 3, kind: input, shape index: {}]
  %s4 = inlined_call_operand.hbm [shape: f32[32,128], index: 4, kind: input, shape index: {}]
  %s5 = inlined_call_operand.vmem [shape: f32[1,128], index: 5, kind: input, shape index: {}]
  %s6 = inlined_call_operand.hbm [shape: f32[8,128], index: 6, kind: output, shape index: {}]
  %s7 = sld [smem:[#allocation0]]
  $region77: #{tpu_custom_call.1} parent=0
    _
  %s9 = ssub.s32 1, %s7
  %s10 = scalar_select 0, %s9, %s7
  $region1: #{tpu_custom_call.1} parent=0
    #allocation3 [shape = 'u8[122880]{0}', space=vmem, size = 0x1e000, scoped, tag = 'input window, operand 0']
    #allocation4 [shape = 's32[2]{0}', space=sflag, size = 0x8, scoped, tag = 'scoped memory for tpu_custom_call.1']
    #allocation5 [shape = 's32[2]{0}', space=sflag, size = 0x8, scoped, tag = 'scoped memory for tpu_custom_call.1']
    #allocation6 [shape = 'u8[196608]{0}', space=vmem, size = 0x30000, scoped, tag = 'input window, operand 1, single buffered']
    #allocation7 [shape = 's32[1]{0}', space=sflag, size = 0x4, scoped, tag = 'scoped memory for tpu_custom_call.1']
    #allocation8 [shape = 'u8[16384]{0}', space=vmem, size = 0x4000, scoped, tag = 'input window, operand 2, single buffered']
    #allocation9 [shape = 'u8[16384]{0}', space=vmem, size = 0x4000, scoped, tag = 'input window, operand 4, single buffered']
    #allocation10 [shape = 's32[1]{0}', space=sflag, size = 0x4, scoped, tag = 'scoped memory for tpu_custom_call.1']
    #allocation11 [shape = 'u8[4096]{0}', space=vmem, size = 0x1000, scoped, tag = 'output window, operand 0, single buffered']
    %11 = vsyncpa [#allocation4], 0
    %s12 = scalar_lea.sflag [#allocation4], 1
    %13 = vsyncpa %s12, 0
    %14 = vsyncpa [#allocation7], 0
    %15 = vsyncpa [#allocation10], 0
    %16 = vsyncpa [#allocation5], 0
    loop: start=0, step=1, limit=5
    $region2: #{tpu_custom_call.1} parent=1 // loop_pre_header
      _
    $region3: #{tpu_custom_call.1} parent=1 // loop_header
      %s18 = sphi 0, %s22
      %p19 = scmp.ge.s32.totalorder %s18, 5
      %s28 = sphi 0, %s30
      %s31 = sphi 0, %s28
      %s32 = sphi 0, %s31
      %s48 = sphi 0, %s32
      %s52 = sphi 0, %s52
      %s54 = sphi 0, %s52
      %s55 = sphi 0, %s54
      %s69 = sphi 0, %s55
      %s73 = sphi 0, %s73
      %s75 = sphi 0, %s73
      %s76 = sphi 0, %s75
      %s90 = sphi 0, %s76
      %s94 = sphi 0, %s94
      %s96 = sphi 0, %s94
      %s97 = sphi 0, %s96
      %s111 = sphi 0, %s97
      %s115 = sphi 0, %s115
      %s117 = sphi 0, %s115
      %s118 = sphi 0, %s117
      %s132 = sphi 0, %s118
      %s136 = sphi 0, %s136
      %s138 = sphi 0, %s136
      %s139 = sphi 0, %s138
      %s153 = sphi 0, %s139
      %s157 = sphi 0, %s157
      %s159 = sphi 0, %s157
      %s160 = sphi 0, %s159
      %s174 = sphi 0, %s160
    $region4: #{tpu_custom_call.1} parent=1 // loop_header_branch
      %21 = sbr.rel (%p19) target = $region8
    $region5: #{tpu_custom_call.1} parent=1 // loop_body
      %s23 = ssub.s32 %s18, 1
      %s24 = ssub.s32 %s18, 2
      %s25 = sadd.s32 %s18, 1
      %s26 = ssub.s32 %s18, %s25
      %p27 = scmp.eq.s32.totalorder %s26, 0
      %s29 = sadd.s32 %s28, 1
      %s30 = scalar_select %p27, %s28, %s29
      %p33 = pneg %p27
      %p34 = scmp.eq.s32.totalorder %s18, 2
      %p35 = por %p33, %p34
      %p36 = scmp.ne.s32.totalorder %s28, %s31
      %p37 = scmp.eq.s32.totalorder %s18, 0
      %p38 = por %p36, %p37
      %p39 = scmp.ne.s32.totalorder %s28, %s31
      %p40 = scmp.eq.s32.totalorder %s23, 2
      %p41 = por %p39, %p40
      %p42 = scmp.ne.s32.totalorder %s31, %s32
      %p43 = scmp.eq.s32.totalorder %s23, 0
      %p44 = por %p42, %p43
      %p45 = scmp.ne.s32.totalorder %s31, %s32
      %p46 = scmp.eq.s32.totalorder %s24, 2
      %p47 = por %p45, %p46
      %p49 = scmp.ne.s32.totalorder %s32, %s48
      %p50 = scmp.eq.s32.totalorder %s24, 0
      %p51 = por %p49, %p50
      %s53 = sadd.s32 %s52, 1
      %p56 = scmp.eq.s32.totalorder %s18, 2
      %p57 = scmp.ne.s32.totalorder %s52, %s54
      %p58 = scmp.eq.s32.totalorder %s18, 0
      %p59 = por %p57, %p58
      %p60 = scmp.ne.s32.totalorder %s52, %s54
      %p61 = scmp.eq.s32.totalorder %s23, 2
      %p62 = por %p60, %p61
      %p63 = scmp.ne.s32.totalorder %s54, %s55
      %p64 = scmp.eq.s32.totalorder %s23, 0
      %p65 = por %p63, %p64
      %p66 = scmp.ne.s32.totalorder %s54, %s55
      %p67 = scmp.eq.s32.totalorder %s24, 2
      %p68 = por %p66, %p67
      %p70 = scmp.ne.s32.totalorder %s55, %s69
      %p71 = scmp.eq.s32.totalorder %s24, 0
      %p72 = por %p70, %p71
      %s74 = sadd.s32 %s73, 1
      %p77 = scmp.eq.s32.totalorder %s18, 2
      %p78 = scmp.ne.s32.totalorder %s73, %s75
      %p79 = scmp.eq.s32.totalorder %s18, 0
      %p80 = por %p78, %p79
      %p81 = scmp.ne.s32.totalorder %s73, %s75
      %p82 = scmp.eq.s32.totalorder %s23, 2
      %p83 = por %p81, %p82
      %p84 = scmp.ne.s32.totalorder %s75, %s76
      %p85 = scmp.eq.s32.totalorder %s23, 0
      %p86 = por %p84, %p85
      %p87 = scmp.ne.s32.totalorder %s75, %s76
      %p88 = scmp.eq.s32.totalorder %s24, 2
      %p89 = por %p87, %p88
      %p91 = scmp.ne.s32.totalorder %s76, %s90
      %p92 = scmp.eq.s32.totalorder %s24, 0
      %p93 = por %p91, %p92
      %s95 = sadd.s32 %s94, 1
      %p98 = scmp.eq.s32.totalorder %s18, 2
      %p99 = scmp.ne.s32.totalorder %s94, %s96
      %p100 = scmp.eq.s32.totalorder %s18, 0
      %p101 = por %p99, %p100
      %p102 = scmp.ne.s32.totalorder %s94, %s96
      %p103 = scmp.eq.s32.totalorder %s23, 2
      %p104 = por %p102, %p103
      %p105 = scmp.ne.s32.totalorder %s96, %s97
      %p106 = scmp.eq.s32.totalorder %s23, 0
      %p107 = por %p105, %p106
      %p108 = scmp.ne.s32.totalorder %s96, %s97
      %p109 = scmp.eq.s32.totalorder %s24, 2
      %p110 = por %p108, %p109
      %p112 = scmp.ne.s32.totalorder %s97, %s111
      %p113 = scmp.eq.s32.totalorder %s24, 0
      %p114 = por %p112, %p113
      %s116 = sadd.s32 %s115, 1
      %p119 = scmp.eq.s32.totalorder %s18, 2
      %p120 = scmp.ne.s32.totalorder %s115, %s117
      %p121 = scmp.eq.s32.totalorder %s18, 0
      %p122 = por %p120, %p121
      %p123 = scmp.ne.s32.totalorder %s115, %s117
      %p124 = scmp.eq.s32.totalorder %s23, 2
      %p125 = por %p123, %p124
      %p126 = scmp.ne.s32.totalorder %s117, %s118
      %p127 = scmp.eq.s32.totalorder %s23, 0
      %p128 = por %p126, %p127
      %p129 = scmp.ne.s32.totalorder %s117, %s118
      %p130 = scmp.eq.s32.totalorder %s24, 2
      %p131 = por %p129, %p130
      %p133 = scmp.ne.s32.totalorder %s118, %s132
      %p134 = scmp.eq.s32.totalorder %s24, 0
      %p135 = por %p133, %p134
      %s137 = sadd.s32 %s136, 1
      %p140 = scmp.eq.s32.totalorder %s18, 2
      %p141 = scmp.ne.s32.totalorder %s136, %s138
      %p142 = scmp.eq.s32.totalorder %s18, 0
      %p143 = por %p141, %p142
      %p144 = scmp.ne.s32.totalorder %s136, %s138
      %p145 = scmp.eq.s32.totalorder %s23, 2
      %p146 = por %p144, %p145
      %p147 = scmp.ne.s32.totalorder %s138, %s139
      %p148 = scmp.eq.s32.totalorder %s23, 0
      %p149 = por %p147, %p148
      %p150 = scmp.ne.s32.totalorder %s138, %s139
      %p151 = scmp.eq.s32.totalorder %s24, 2
      %p152 = por %p150, %p151
      %p154 = scmp.ne.s32.totalorder %s139, %s153
      %p155 = scmp.eq.s32.totalorder %s24, 0
      %p156 = por %p154, %p155
      %s158 = sadd.s32 %s157, 1
      %p161 = scmp.eq.s32.totalorder %s18, 2
      %p162 = scmp.ne.s32.totalorder %s157, %s159
      %p163 = scmp.eq.s32.totalorder %s18, 0
      %p164 = por %p162, %p163
      %p165 = scmp.ne.s32.totalorder %s157, %s159
      %p166 = scmp.eq.s32.totalorder %s23, 2
      %p167 = por %p165, %p166
      %p168 = scmp.ne.s32.totalorder %s159, %s160
      %p169 = scmp.eq.s32.totalorder %s23, 0
      %p170 = por %p168, %p169
      %p171 = scmp.ne.s32.totalorder %s159, %s160
      %p172 = scmp.eq.s32.totalorder %s24, 2
      %p173 = por %p171, %p172
      %p175 = scmp.ne.s32.totalorder %s160, %s174
      %p176 = scmp.eq.s32.totalorder %s24, 0
      %p177 = por %p175, %p176
      %p178 = scmp.le.s32.totalorder 1, %s18
      %p179 = scmp.lt.s32.totalorder %s18, 4
      %p180 = pnand %p178, %p179
      %p181 = pneg %p180
      // Predicated region
      $region9: #{tpu_custom_call.1} parent=5 // pred_check
        _
      $region10: #{tpu_custom_call.1} parent=5 // pred_check_branch
        %183 = sbr.rel (%p180) target = $region12
      $region11: #{tpu_custom_call.1} parent=5 // pred_region
        %s184 = ssub.s32 %s18, 1
        // Predicated region
        $region13: #{tpu_custom_call.1} parent=11 // pred_check
          %p185 = pneg %p65
        $region14: #{tpu_custom_call.1} parent=11 // pred_check_branch
          %187 = sbr.rel (%p185) target = $region16
        $region15: #{tpu_custom_call.1} parent=11 // pred_region
          %s189 = ssub.s32 6144, 6144
          %190 = vsyncadd [#allocation7], %s189
          %s191 = sshll.u32 [#allocation6], 4
          %s192 = int_to_ptr.vmem [resolvable:$true] %s191
          %197 = dma.hbm_to_vmem [thread:$0]  %s1, 6144, %s192, [#allocation7], 128, 128, 8
        $region16: #{tpu_custom_call.1} parent=11 // pred_fallthru
          _
        // Predicated region
        $region17: #{tpu_custom_call.1} parent=11 // pred_check
          %p198 = pneg %p86
        $region18: #{tpu_custom_call.1} parent=11 // pred_check_branch
          %200 = sbr.rel (%p198) target = $region20
        $region19: #{tpu_custom_call.1} parent=11 // pred_region
          %s202 = ssub.s32 512, 512
          %203 = vsyncadd [#allocation7], %s202
          %s204 = sshll.u32 [#allocation8], 4
          %s205 = int_to_ptr.vmem [resolvable:$true] %s204
          %210 = dma.hbm_to_vmem [thread:$0]  %s2, 512, %s205, [#allocation7], 128, 128, 8
        $region20: #{tpu_custom_call.1} parent=11 // pred_fallthru
          _
        // Predicated region
        $region21: #{tpu_custom_call.1} parent=11 // pred_check
          %p211 = pneg %p107
        $region22: #{tpu_custom_call.1} parent=11 // pred_check_branch
          %213 = sbr.rel (%p211) target = $region24
        $region23: #{tpu_custom_call.1} parent=11 // pred_region
          _
        $region24: #{tpu_custom_call.1} parent=11 // pred_fallthru
          _
        // Predicated region
        $region25: #{tpu_custom_call.1} parent=11 // pred_check
          %p214 = pneg %p128
        $region26: #{tpu_custom_call.1} parent=11 // pred_check_branch
          %216 = sbr.rel (%p214) target = $region28
        $region27: #{tpu_custom_call.1} parent=11 // pred_region
          %s218 = ssub.s32 512, 512
          %219 = vsyncadd [#allocation10], %s218
          %s220 = sshll.u32 [#allocation9], 4
          %s221 = int_to_ptr.vmem [resolvable:$true] %s220
          %226 = dma.hbm_to_vmem [thread:$0]  %s4, 512, %s221, [#allocation10], 128, 128, 8
        $region28: #{tpu_custom_call.1} parent=11 // pred_fallthru
          _
        // Predicated region
        $region29: #{tpu_custom_call.1} parent=11 // pred_check
          %p227 = pneg %p149
        $region30: #{tpu_custom_call.1} parent=11 // pred_check_branch
          %229 = sbr.rel (%p227) target = $region32
        $region31: #{tpu_custom_call.1} parent=11 // pred_region
          _
        $region32: #{tpu_custom_call.1} parent=11 // pred_fallthru
          _
      $region12: #{tpu_custom_call.1} parent=5 // pred_fallthru
        _
      %p230 = scmp.lt.s32.totalorder %s18, 3
      // Predicated region
      $region33: #{tpu_custom_call.1} parent=5 // pred_check
        %p231 = pneg %p230
      $region34: #{tpu_custom_call.1} parent=5 // pred_check_branch
        %233 = sbr.rel (%p231) target = $region36
      $region35: #{tpu_custom_call.1} parent=5 // pred_region
        // Predicated region
        $region37: #{tpu_custom_call.1} parent=35 // pred_check
          %p234 = pneg %p38
        $region38: #{tpu_custom_call.1} parent=35 // pred_check_branch
          %236 = sbr.rel (%p234) target = $region40
        $region39: #{tpu_custom_call.1} parent=35 // pred_region
          %s237 = sand.u32 %s28, 1
          %s238 = scalar_lea.sflag [#allocation4], %s237
          %s239 = sand.u32 %s28, 1
          %s240 = smul.addr %s239, 120
          %s241 = scalar_lea.vmem [#allocation3], %s240
          %s242 = smul.u32 5, %s18
          %s244 = ssub.s32 1920, 1920
          %245 = vsyncadd %s238, %s244
          %s246 = smul.addr %s242, 3
          %s247 = smul.addr %s246, 128
          %s248 = scalar_lea.hbm %s0, %s247
          %s249 = sshll.u32 %s241, 4
          %s250 = int_to_ptr.vmem [resolvable:$true] %s249
          %255 = dma.hbm_to_vmem [thread:$0]  %s248, 1920, %s250, %s238, 384, 384, 24
        $region40: #{tpu_custom_call.1} parent=35 // pred_fallthru
          _
      $region36: #{tpu_custom_call.1} parent=5 // pred_fallthru
        _
      %p256 = scmp.le.s32.totalorder 1, %s18
      %p257 = scmp.lt.s32.totalorder %s18, 4
      %p258 = pnand %p256, %p257
      %p259 = pneg %p258
      // Predicated region
      $region41: #{tpu_custom_call.1} parent=5 // pred_check
        _
      $region42: #{tpu_custom_call.1} parent=5 // pred_check_branch
        %261 = sbr.rel (%p258) target = $region44
      $region43: #{tpu_custom_call.1} parent=5 // pred_region
        %s262 = ssub.s32 %s18, 1
        %s263 = sand.u32 %s31, 1
        %s264 = scalar_lea.sflag [#allocation4], %s263
        %s265 = sand.u32 %s31, 1
        %s266 = smul.addr %s265, 120
        %s267 = scalar_lea.vmem [#allocation3], %s266
        // Predicated region
        $region45: #{tpu_custom_call.1} parent=43 // pred_check
          %p268 = pneg %p44
        $region46: #{tpu_custom_call.1} parent=43 // pred_check_branch
          %270 = sbr.rel (%p268) target = $region48
        $region47: #{tpu_custom_call.1} parent=43 // pred_region
          %271 = dma.done %s264, 1920
        $region48: #{tpu_custom_call.1} parent=43 // pred_fallthru
          _
        // Predicated region
        $region49: #{tpu_custom_call.1} parent=43 // pred_check
          %p272 = pneg %p65
        $region50: #{tpu_custom_call.1} parent=43 // pred_check_branch
          %274 = sbr.rel (%p272) target = $region52
        $region51: #{tpu_custom_call.1} parent=43 // pred_region
          %275 = dma.done [#allocation7], 6144
        $region52: #{tpu_custom_call.1} parent=43 // pred_fallthru
          _
        // Predicated region
        $region53: #{tpu_custom_call.1} parent=43 // pred_check
          %p276 = pneg %p86
        $region54: #{tpu_custom_call.1} parent=43 // pred_check_branch
          %278 = sbr.rel (%p276) target = $region56
        $region55: #{tpu_custom_call.1} parent=43 // pred_region
          %279 = dma.done [#allocation7], 512
        $region56: #{tpu_custom_call.1} parent=43 // pred_fallthru
          _
        // Predicated region
        $region57: #{tpu_custom_call.1} parent=43 // pred_check
          %p280 = pneg %p128
        $region58: #{tpu_custom_call.1} parent=43 // pred_check_branch
          %282 = sbr.rel (%p280) target = $region60
        $region59: #{tpu_custom_call.1} parent=43 // pred_region
          %283 = dma.done [#allocation10], 512
        $region60: #{tpu_custom_call.1} parent=43 // pred_fallthru
          _
        %s284 = sand.u32 %s31, 1
        %s285 = scalar_lea.sflag [#allocation4], %s284
        %s286 = sand.u32 %s31, 1
        %s287 = smul.addr %s286, 120
        %s288 = scalar_lea.vmem [#allocation3], %s287
        %p289 = pneg %p44
        %p290 = pneg %p41
        %p291 = pneg %p65
        %p292 = pneg %p62
        %p293 = pneg %p86
        %p294 = pneg %p83
        %p295 = pneg %p107
        %p296 = pneg %p104
        %p297 = pneg %p128
        %p298 = pneg %p125
        %p299 = pneg %p149
        %p300 = pneg %p146
        %p301 = pneg %p170
        %p302 = pneg %p167
        %s303 = smul.u32 5, %s23
        %s304 = smul.u32 %s23, 40
        %v305 = vld [vmem:[%s267] sm:$0xff]
        %v306 = vld [vmem:[%s267 + $0x8] sm:$0xff]
        %v307 = vld [vmem:[%s267 + $0x10] sm:$0xff]
        %v308 = vld [vmem:[%s267 + $0x18] sm:$0xff]
        %v309 = vld [vmem:[%s267 + $0x20] sm:$0xff]
        %v310 = vld [vmem:[%s267 + $0x28] sm:$0xff]
        %v311 = vld [vmem:[%s267 + $0x30] sm:$0xff]
        %v312 = vld [vmem:[%s267 + $0x38] sm:$0xff]
        %v313 = vld [vmem:[%s267 + $0x40] sm:$0xff]
        %v314 = vld [vmem:[%s267 + $0x48] sm:$0xff]
        %v315 = vld [vmem:[%s267 + $0x50] sm:$0xff]
        %v316 = vld [vmem:[%s267 + $0x58] sm:$0xff]
        %v317 = vld [vmem:[%s267 + $0x60] sm:$0xff]
        %v318 = vld [vmem:[%s267 + $0x68] sm:$0xff]
        %v319 = vld [vmem:[%s267 + $0x70] sm:$0xff]
        %v320 = vld [vmem:[#allocation6] sm:$0xff]
        %v321 = vld [vmem:[#allocation6 + $0x8] sm:$0xff]
        %v322 = vld [vmem:[#allocation6 + $0x10] sm:$0xff]
        %v323 = vld [vmem:[#allocation6 + $0x18] sm:$0xff]
        %v324 = vld [vmem:[#allocation6 + $0x20] sm:$0xff]
        %v325 = vld [vmem:[#allocation6 + $0x28] sm:$0xff]
        %v326 = vld [vmem:[#allocation6 + $0x30] sm:$0xff]
        %v327 = vld [vmem:[#allocation6 + $0x38] sm:$0xff]
        %v328 = vld [vmem:[#allocation6 + $0x40] sm:$0xff]
        %v329 = vld [vmem:[#allocation6 + $0x48] sm:$0xff]
        %v330 = vld [vmem:[#allocation6 + $0x50] sm:$0xff]
        %v331 = vld [vmem:[#allocation6 + $0x58] sm:$0xff]
        %v332 = vld [vmem:[#allocation6 + $0x60] sm:$0xff]
        %v333 = vld [vmem:[#allocation6 + $0x68] sm:$0xff]
        %v334 = vld [vmem:[#allocation6 + $0x70] sm:$0xff]
        %v335 = vld [vmem:[#allocation6 + $0x78] sm:$0xff]
        %v336 = vld [vmem:[#allocation6 + $0x80] sm:$0xff]
        %v337 = vld [vmem:[#allocation6 + $0x88] sm:$0xff]
        %v338 = vld [vmem:[#allocation6 + $0x90] sm:$0xff]
        %v339 = vld [vmem:[#allocation6 + $0x98] sm:$0xff]
        %v340 = vld [vmem:[#allocation6 + $0xa0] sm:$0xff]
        %v341 = vld [vmem:[#allocation6 + $0xa8] sm:$0xff]
        %v342 = vld [vmem:[#allocation6 + $0xb0] sm:$0xff]
        %v343 = vld [vmem:[#allocation6 + $0xb8] sm:$0xff]
        %v344 = vld [vmem:[#allocation6 + $0xc0] sm:$0xff]
        %v345 = vld [vmem:[#allocation6 + $0xc8] sm:$0xff]
        %v346 = vld [vmem:[#allocation6 + $0xd0] sm:$0xff]
        %v347 = vld [vmem:[#allocation6 + $0xd8] sm:$0xff]
        %v348 = vld [vmem:[#allocation6 + $0xe0] sm:$0xff]
        %v349 = vld [vmem:[#allocation6 + $0xe8] sm:$0xff]
        %v350 = vld [vmem:[#allocation6 + $0xf0] sm:$0xff]
        %v351 = vld [vmem:[#allocation6 + $0xf8] sm:$0xff]
        %v352 = vld [vmem:[#allocation6 + $0x100] sm:$0xff]
        %v353 = vld [vmem:[#allocation6 + $0x108] sm:$0xff]
        %v354 = vld [vmem:[#allocation6 + $0x110] sm:$0xff]
        %v355 = vld [vmem:[#allocation6 + $0x118] sm:$0xff]
        %v356 = vld [vmem:[#allocation6 + $0x120] sm:$0xff]
        %v357 = vld [vmem:[#allocation6 + $0x128] sm:$0xff]
        %v358 = vld [vmem:[#allocation6 + $0x130] sm:$0xff]
        %v359 = vld [vmem:[#allocation6 + $0x138] sm:$0xff]
        %v360 = vld [vmem:[#allocation6 + $0x140] sm:$0xff]
        %v361 = vld [vmem:[#allocation6 + $0x148] sm:$0xff]
        %v362 = vld [vmem:[#allocation6 + $0x150] sm:$0xff]
        %v363 = vld [vmem:[#allocation6 + $0x158] sm:$0xff]
        %v364 = vld [vmem:[#allocation6 + $0x160] sm:$0xff]
        %v365 = vld [vmem:[#allocation6 + $0x168] sm:$0xff]
        %v366 = vld [vmem:[#allocation6 + $0x170] sm:$0xff]
        %v367 = vld [vmem:[#allocation6 + $0x178] sm:$0xff]
        %v368 = vld [vmem:[%s3] sm:$0x1]
        %v370 = vlaneseq
        %v371 = vshrl.u32 %v370, 7
        %v372 = vsub.s32 0, %v371
        %v373 = vrot.slane %v368, %v372
        %375 = vmatprep.subr.mxu0 0.0
        %376 = vmatpush1.msra.mxu0 %v320
        %377 = vmatprep.subr.mxu0 0.0
        %378 = vmatpush1.msra.mxu0 %v321
        %379 = vmatprep.subr.mxu0 0.0
        %380 = vmatpush1.msra.mxu0 %v322
        %381 = vmatprep.subr.mxu0 0.0
        %382 = vmatpush1.msra.mxu0 %v323
        %383 = vmatprep.subr.mxu0 0.0
        %384 = vmatpush1.msra.mxu0 %v324
        %385 = vmatprep.subr.mxu0 0.0
        %386 = vmatpush1.msra.mxu0 %v325
        %387 = vmatprep.subr.mxu0 0.0
        %388 = vmatpush1.msra.mxu0 %v326
        %389 = vmatprep.subr.mxu0 0.0
        %390 = vmatpush1.msra.mxu0 %v327
        %391 = vmatprep.subr.mxu0 0.0
        %392 = vmatpush1.msra.mxu0 %v328
        %393 = vmatprep.subr.mxu0 0.0
        %394 = vmatpush1.msra.mxu0 %v329
        %395 = vmatprep.subr.mxu0 0.0
        %396 = vmatpush1.msra.mxu0 %v330
        %397 = vmatprep.subr.mxu0 0.0
        %398 = vmatpush1.msra.mxu0 %v331
        %399 = vmatprep.subr.mxu0 0.0
        %400 = vmatpush1.msra.mxu0 %v332
        %401 = vmatprep.subr.mxu0 0.0
        %402 = vmatpush1.msra.mxu0 %v333
        %403 = vmatprep.subr.mxu0 0.0
        %404 = vmatpush1.msra.mxu0 %v334
        %405 = vmatprep.subr.mxu0 0.0
        %406 = vmatpush1.msra.mxu0 %v335
        %407 = vmatprep.subr.mxu0 0.0
        %408 = vmatpush1.msra.mxu0 %v336
        %409 = vmatprep.subr.mxu0 0.0
        %410 = vmatpush1.msra.mxu0 %v337
        %411 = vmatprep.subr.mxu0 0.0
        %412 = vmatpush1.msra.mxu0 %v338
        %413 = vmatprep.subr.mxu0 0.0
        %414 = vmatpush1.msra.mxu0 %v339
        %415 = vmatprep.subr.mxu0 0.0
        %416 = vmatpush1.msra.mxu0 %v340
        %417 = vmatprep.subr.mxu0 0.0
        %418 = vmatpush1.msra.mxu0 %v341
        %419 = vmatprep.subr.mxu0 0.0
        %420 = vmatpush1.msra.mxu0 %v342
        %421 = vmatprep.subr.mxu0 0.0
        %422 = vmatpush1.msra.mxu0 %v343
        %423 = vmatprep.subr.mxu0 0.0
        %424 = vmatpush1.msra.mxu0 %v344
        %425 = vmatprep.subr.mxu0 0.0
        %426 = vmatpush1.msra.mxu0 %v345
        %427 = vmatprep.subr.mxu0 0.0
        %428 = vmatpush1.msra.mxu0 %v346
        %429 = vmatprep.subr.mxu0 0.0
        %430 = vmatpush1.msra.mxu0 %v347
        %431 = vmatprep.subr.mxu0 0.0
        %432 = vmatpush1.msra.mxu0 %v348
        %433 = vmatprep.subr.mxu0 0.0
        %434 = vmatpush1.msra.mxu0 %v349
        %435 = vmatprep.subr.mxu0 0.0
        %436 = vmatpush1.msra.mxu0 %v350
        %437 = vmatprep.subr.mxu0 0.0
        %438 = vmatpush1.msra.mxu0 %v351
        %439 = vmatprep.mubr.f32.mxu0 %v306
        %440 = vmatmul.mubr.f32.gmra.mrb[0].mxu0 %v305
        %v441 = vpop.f32.mrb[0].mxu0
        %v442 = vadd.f32 %v373, %v441
        %v443 = vpop.f32.mrb[0].mxu0
        %444 = vmatprep.mubr.f32.mxu0 %v309
        %445 = vmatmul.mubr.f32.gmra.mrb[0].mxu0 %v308
        %v446 = vpop.f32.mrb[0].mxu0
        %v447 = vadd.f32 %v373, %v446
        %v448 = vpop.f32.mrb[0].mxu0
        %449 = vmatprep.mubr.f32.mxu0 %v312
        %450 = vmatmul.mubr.f32.gmra.mrb[0].mxu0 %v311
        %v451 = vpop.f32.mrb[0].mxu0
        %v452 = vadd.f32 %v373, %v451
        %v453 = vpop.f32.mrb[0].mxu0
        %454 = vmatprep.mubr.f32.mxu0 %v315
        %455 = vmatmul.mubr.f32.gmra.mrb[0].mxu0 %v314
        %v456 = vpop.f32.mrb[0].mxu0
        %v457 = vadd.f32 %v373, %v456
        %v458 = vpop.f32.mrb[0].mxu0
        %459 = vmatprep.mubr.f32.mxu0 %v318
        %460 = vmatmul.mubr.f32.gmra.mrb[0].mxu0 %v317
        %v461 = vpop.f32.mrb[0].mxu0
        %v462 = vadd.f32 %v373, %v461
        %v463 = vpop.f32.mrb[0].mxu0
        %464 = vdwg.mxu0
        %465 = vmatprep.subr.mxu0 0.0
        %466 = vmatpush1.msra.mxu0 %v352
        %467 = vmatprep.subr.mxu0 0.0
        %468 = vmatpush1.msra.mxu0 %v353
        %469 = vmatprep.subr.mxu0 0.0
        %470 = vmatpush1.msra.mxu0 %v354
        %471 = vmatprep.subr.mxu0 0.0
        %472 = vmatpush1.msra.mxu0 %v355
        %473 = vmatprep.subr.mxu0 0.0
        %474 = vmatpush1.msra.mxu0 %v356
        %475 = vmatprep.subr.mxu0 0.0
        %476 = vmatpush1.msra.mxu0 %v357
        %477 = vmatprep.subr.mxu0 0.0
        %478 = vmatpush1.msra.mxu0 %v358
        %479 = vmatprep.subr.mxu0 0.0
        %480 = vmatpush1.msra.mxu0 %v359
        %481 = vmatprep.subr.mxu0 0.0
        %482 = vmatpush1.msra.mxu0 %v360
        %483 = vmatprep.subr.mxu0 0.0
        %484 = vmatpush1.msra.mxu0 %v361
        %485 = vmatprep.subr.mxu0 0.0
        %486 = vmatpush1.msra.mxu0 %v362
        %487 = vmatprep.subr.mxu0 0.0
        %488 = vmatpush1.msra.mxu0 %v363
        %489 = vmatprep.subr.mxu0 0.0
        %490 = vmatpush1.msra.mxu0 %v364
        %491 = vmatprep.subr.mxu0 0.0
        %492 = vmatpush1.msra.mxu0 %v365
        %493 = vmatprep.subr.mxu0 0.0
        %494 = vmatpush1.msra.mxu0 %v366
        %495 = vmatprep.subr.mxu0 0.0
        %496 = vmatpush1.msra.mxu0 %v367
        %497 = vmatprep.subr.mxu0 0.0
        %498 = vmatpush1.msra.mxu0 0.0
        %499 = vmatprep.subr.mxu0 0.0
        %500 = vmatpush1.msra.mxu0 0.0
        %501 = vmatprep.subr.mxu0 0.0
        %502 = vmatpush1.msra.mxu0 0.0
        %503 = vmatprep.subr.mxu0 0.0
        %504 = vmatpush1.msra.mxu0 0.0
        %505 = vmatprep.subr.mxu0 0.0
        %506 = vmatpush1.msra.mxu0 0.0
        %507 = vmatprep.subr.mxu0 0.0
        %508 = vmatpush1.msra.mxu0 0.0
        %509 = vmatprep.subr.mxu0 0.0
        %510 = vmatpush1.msra.mxu0 0.0
        %511 = vmatprep.subr.mxu0 0.0
        %512 = vmatpush1.msra.mxu0 0.0
        %513 = vmatprep.subr.mxu0 0.0
        %514 = vmatpush1.msra.mxu0 0.0
        %515 = vmatprep.subr.mxu0 0.0
        %516 = vmatpush1.msra.mxu0 0.0
        %517 = vmatprep.subr.mxu0 0.0
        %518 = vmatpush1.msra.mxu0 0.0
        %519 = vmatprep.subr.mxu0 0.0
        %520 = vmatpush1.msra.mxu0 0.0
        %521 = vmatprep.subr.mxu0 0.0
        %522 = vmatpush1.msra.mxu0 0.0
        %523 = vmatprep.subr.mxu0 0.0
        %524 = vmatpush1.msra.mxu0 0.0
        %525 = vmatprep.subr.mxu0 0.0
        %526 = vmatpush1.msra.mxu0 0.0
        %527 = vmatprep.subr.mxu0 0.0
        %528 = vmatpush1.msra.mxu0 0.0
        %529 = vmatprep.mubr.f32.mxu0 0.0
        %530 = vmatmul.mubr.f32.gmra.mrb[0].mxu0 %v307
        %v531 = vpop.f32.mrb[0].mxu0
        %v532 = vadd.f32 %v442, %v531
        %v533 = vpop.f32.mrb[0].mxu0
        %534 = vmatprep.mubr.f32.mxu0 0.0
        %535 = vmatmul.mubr.f32.gmra.mrb[0].mxu0 %v310
        %v536 = vpop.f32.mrb[0].mxu0
        %v537 = vadd.f32 %v447, %v536
        %v538 = vpop.f32.mrb[0].mxu0
        %539 = vmatprep.mubr.f32.mxu0 0.0
        %540 = vmatmul.mubr.f32.gmra.mrb[0].mxu0 %v313
        %v541 = vpop.f32.mrb[0].mxu0
        %v542 = vadd.f32 %v452, %v541
        %v543 = vpop.f32.mrb[0].mxu0
        %544 = vmatprep.mubr.f32.mxu0 0.0
        %545 = vmatmul.mubr.f32.gmra.mrb[0].mxu0 %v316
        %v546 = vpop.f32.mrb[0].mxu0
        %v547 = vadd.f32 %v457, %v546
        %v548 = vpop.f32.mrb[0].mxu0
        %549 = vmatprep.mubr.f32.mxu0 0.0
        %550 = vmatmul.mubr.f32.gmra.mrb[0].mxu0 %v319
        %v551 = vpop.f32.mrb[0].mxu0
        %v552 = vadd.f32 %v462, %v551
        %v553 = vpop.f32.mrb[0].mxu0
        %554 = vdwg.mxu0
        %s555 = scalar_lea.vmem [#allocation2], %s304
        %556 = vst [vmem:[%s555] sm:$0xff] %v532
        %557 = vst [vmem:[%s555 + $0x8] sm:$0xff] %v537
        %558 = vst [vmem:[%s555 + $0x10] sm:$0xff] %v542
        %559 = vst [vmem:[%s555 + $0x18] sm:$0xff] %v547
        %560 = vst [vmem:[%s555 + $0x20] sm:$0xff] %v552
        %p561 = scmp.eq.s32.totalorder %s23, 2
        // Predicated region
        $region61: #{tpu_custom_call.1} parent=43 // pred_check
          %p562 = pneg %p561
        $region62: #{tpu_custom_call.1} parent=43 // pred_check_branch
          %564 = sbr.rel (%p562) target = $region64
        $region63: #{tpu_custom_call.1} parent=43 // pred_region
          %v565 = vld [vmem:[#allocation8] sm:$0xff]
          %v566 = vld [vmem:[#allocation8 + $0x8] sm:$0xff]
          %v567 = vld [vmem:[#allocation8 + $0x10] sm:$0xff]
          %v568 = vld [vmem:[#allocation8 + $0x18] sm:$0xff]
          %v569 = vld [vmem:[#allocation2] sm:$0xff]
          %vm570 = vcmask 261120
          %v572 = vsel %vm570, 0.0, 0
          %574 = vmatprep.subr.mxu0 0.0
          %575 = vmatpush1.msra.mxu0 %v565
          %576 = vmatprep.subr.mxu0 0.0
          %577 = vmatpush1.msra.mxu0 %v566
          %578 = vmatprep.subr.mxu0 0.0
          %579 = vmatpush1.msra.mxu0 %v567
          %580 = vmatprep.subr.mxu0 0.0
          %581 = vmatpush1.msra.mxu0 %v568
          %582 = vmatprep.subr.mxu0 0.0
          %583 = vmatpush1.msra.mxu0 0.0
          %584 = vmatprep.subr.mxu0 0.0
          %585 = vmatpush1.msra.mxu0 0.0
          %586 = vmatprep.subr.mxu0 0.0
          %587 = vmatpush1.msra.mxu0 0.0
          %588 = vmatprep.subr.mxu0 0.0
          %589 = vmatpush1.msra.mxu0 0.0
          %590 = vmatprep.subr.mxu0 0.0
          %591 = vmatpush1.msra.mxu0 0.0
          %592 = vmatprep.subr.mxu0 0.0
          %593 = vmatpush1.msra.mxu0 0.0
          %594 = vmatprep.subr.mxu0 0.0
          %595 = vmatpush1.msra.mxu0 0.0
          %596 = vmatprep.subr.mxu0 0.0
          %597 = vmatpush1.msra.mxu0 0.0
          %598 = vmatprep.subr.mxu0 0.0
          %599 = vmatpush1.msra.mxu0 0.0
          %600 = vmatprep.subr.mxu0 0.0
          %601 = vmatpush1.msra.mxu0 0.0
          %602 = vmatprep.subr.mxu0 0.0
          %603 = vmatpush1.msra.mxu0 0.0
          %604 = vmatprep.subr.mxu0 0.0
          %605 = vmatpush1.msra.mxu0 0.0
          %606 = vmatprep.subr.mxu0 0.0
          %607 = vmatpush1.msra.mxu0 0.0
          %608 = vmatprep.subr.mxu0 0.0
          %609 = vmatpush1.msra.mxu0 0.0
          %610 = vmatprep.subr.mxu0 0.0
          %611 = vmatpush1.msra.mxu0 0.0
          %612 = vmatprep.subr.mxu0 0.0
          %613 = vmatpush1.msra.mxu0 0.0
          %614 = vmatprep.subr.mxu0 0.0
          %615 = vmatpush1.msra.mxu0 0.0
          %616 = vmatprep.subr.mxu0 0.0
          %617 = vmatpush1.msra.mxu0 0.0
          %618 = vmatprep.subr.mxu0 0.0
          %619 = vmatpush1.msra.mxu0 0.0
          %620 = vmatprep.subr.mxu0 0.0
          %621 = vmatpush1.msra.mxu0 0.0
          %622 = vmatprep.subr.mxu0 0.0
          %623 = vmatpush1.msra.mxu0 0.0
          %624 = vmatprep.subr.mxu0 0.0
          %625 = vmatpush1.msra.mxu0 0.0
          %626 = vmatprep.subr.mxu0 0.0
          %627 = vmatpush1.msra.mxu0 0.0
          %628 = vmatprep.subr.mxu0 0.0
          %629 = vmatpush1.msra.mxu0 0.0
          %630 = vmatprep.subr.mxu0 0.0
          %631 = vmatpush1.msra.mxu0 0.0
          %632 = vmatprep.subr.mxu0 0.0
          %633 = vmatpush1.msra.mxu0 0.0
          %634 = vmatprep.subr.mxu0 0.0
          %635 = vmatpush1.msra.mxu0 0.0
          %636 = vmatprep.subr.mxu0 0.0
          %637 = vmatpush1.msra.mxu0 0.0
          %638 = vmatprep.mubr.f32.mxu0 0.0
          %639 = vmatmul.mubr.f32.gmra.mrb[0].mxu0 %v572
          %v640 = vpop.f32.mrb[0].mxu0
          %v641 = vadd.f32 0.0, %v640
          %v642 = vpop.f32.mrb[0].mxu0
          %643 = vdwg.mxu0
          %v644 = vadd.f32 %v569, %v641
          %v645 = vxor.u32 %v644, 2147483648
          %v646 = vmul.f32 %v645, 1.442695
          %v647 = vpow.pop %v646
          %v648 = vadd.f32 %v647, 1.0
          %v649 = vrcp.pop %v648
          %v650 = vmul.f32 1.0, %v649
          %v651 = vtanh.pop %v644
          %v652 = vmul.f32 %v650, 0.0
          %654 = vrot.lane.b32.xlu0 %v651, 64
          %v655 = vpop.permute.xlu0 %654
          %v657 = vmul.f32 %v650, %v655
          %659 = vrot.lane.b32.xlu0 %v657, 32
          %v660 = vpop.permute.xlu0 %659
          %v662 = vadd.f32 %v652, %v660
          %v663 = vtanh.pop %v662
          %665 = vrot.lane.b32.xlu0 %v663, 64
          %v666 = vpop.permute.xlu0 %665
          %v668 = vmul.f32 %v650, %v666
          %s669 = scalar_lea.vmem [#allocation2], 8
          %v670 = vld [vmem:[%s669] sm:$0xff]
          %672 = vrot.lane.b32.xlu0 %v668, 32
          %v673 = vpop.permute.xlu0 %672
          %v674 = vsel %vm570, %v673, 0
          %676 = vmatprep.subr.mxu0 0.0
          %677 = vmatpush1.msra.mxu0 %v565
          %678 = vmatprep.subr.mxu0 0.0
          %679 = vmatpush1.msra.mxu0 %v566
          %680 = vmatprep.subr.mxu0 0.0
          %681 = vmatpush1.msra.mxu0 %v567
          %682 = vmatprep.subr.mxu0 0.0
          %683 = vmatpush1.msra.mxu0 %v568
          %684 = vmatprep.subr.mxu0 0.0
          %685 = vmatpush1.msra.mxu0 0.0
          %686 = vmatprep.subr.mxu0 0.0
          %687 = vmatpush1.msra.mxu0 0.0
          %688 = vmatprep.subr.mxu0 0.0
          %689 = vmatpush1.msra.mxu0 0.0
          %690 = vmatprep.subr.mxu0 0.0
          %691 = vmatpush1.msra.mxu0 0.0
          %692 = vmatprep.subr.mxu0 0.0
          %693 = vmatpush1.msra.mxu0 0.0
          %694 = vmatprep.subr.mxu0 0.0
          %695 = vmatpush1.msra.mxu0 0.0
          %696 = vmatprep.subr.mxu0 0.0
          %697 = vmatpush1.msra.mxu0 0.0
          %698 = vmatprep.subr.mxu0 0.0
          %699 = vmatpush1.msra.mxu0 0.0
          %700 = vmatprep.subr.mxu0 0.0
          %701 = vmatpush1.msra.mxu0 0.0
          %702 = vmatprep.subr.mxu0 0.0
          %703 = vmatpush1.msra.mxu0 0.0
          %704 = vmatprep.subr.mxu0 0.0
          %705 = vmatpush1.msra.mxu0 0.0
          %706 = vmatprep.subr.mxu0 0.0
          %707 = vmatpush1.msra.mxu0 0.0
          %708 = vmatprep.subr.mxu0 0.0
          %709 = vmatpush1.msra.mxu0 0.0
          %710 = vmatprep.subr.mxu0 0.0
          %711 = vmatpush1.msra.mxu0 0.0
          %712 = vmatprep.subr.mxu0 0.0
          %713 = vmatpush1.msra.mxu0 0.0
          %714 = vmatprep.subr.mxu0 0.0
          %715 = vmatpush1.msra.mxu0 0.0
          %716 = vmatprep.subr.mxu0 0.0
          %717 = vmatpush1.msra.mxu0 0.0
          %718 = vmatprep.subr.mxu0 0.0
          %719 = vmatpush1.msra.mxu0 0.0
          %720 = vmatprep.subr.mxu0 0.0
          %721 = vmatpush1.msra.mxu0 0.0
          %722 = vmatprep.subr.mxu0 0.0
          %723 = vmatpush1.msra.mxu0 0.0
          %724 = vmatprep.subr.mxu0 0.0
          %725 = vmatpush1.msra.mxu0 0.0
          %726 = vmatprep.subr.mxu0 0.0
          %727 = vmatpush1.msra.mxu0 0.0
          %728 = vmatprep.subr.mxu0 0.0
          %729 = vmatpush1.msra.mxu0 0.0
          %730 = vmatprep.subr.mxu0 0.0
          %731 = vmatpush1.msra.mxu0 0.0
          %732 = vmatprep.subr.mxu0 0.0
          %733 = vmatpush1.msra.mxu0 0.0
          %734 = vmatprep.subr.mxu0 0.0
          %735 = vmatpush1.msra.mxu0 0.0
          %736 = vmatprep.subr.mxu0 0.0
          %737 = vmatpush1.msra.mxu0 0.0
          %738 = vmatprep.subr.mxu0 0.0
          %739 = vmatpush1.msra.mxu0 0.0
          %740 = vmatprep.mubr.f32.mxu0 0.0
          %741 = vmatmul.mubr.f32.gmra.mrb[0].mxu0 %v674
          %v742 = vpop.f32.mrb[0].mxu0
          %v743 = vadd.f32 0.0, %v742
          %v744 = vpop.f32.mrb[0].mxu0
          %745 = vdwg.mxu0
          %v746 = vadd.f32 %v670, %v743
          %v747 = vxor.u32 %v746, 2147483648
          %v748 = vmul.f32 %v747, 1.442695
          %v749 = vpow.pop %v748
          %v750 = vadd.f32 %v749, 1.0
          %v751 = vrcp.pop %v750
          %v752 = vmul.f32 1.0, %v751
          %v753 = vtanh.pop %v746
          %v754 = vmul.f32 %v752, %v662
          %756 = vrot.lane.b32.xlu0 %v753, 64
          %v757 = vpop.permute.xlu0 %756
          %v759 = vmul.f32 %v752, %v757
          %761 = vrot.lane.b32.xlu0 %v759, 32
          %v762 = vpop.permute.xlu0 %761
          %v764 = vadd.f32 %v754, %v762
          %v765 = vtanh.pop %v764
          %767 = vrot.lane.b32.xlu0 %v765, 64
          %v768 = vpop.permute.xlu0 %767
          %v770 = vmul.f32 %v752, %v768
          %s771 = scalar_lea.vmem [#allocation2], 16
          %v772 = vld [vmem:[%s771] sm:$0xff]
          %774 = vrot.lane.b32.xlu0 %v770, 32
          %v775 = vpop.permute.xlu0 %774
          %v776 = vsel %vm570, %v775, 0
          %778 = vmatprep.subr.mxu0 0.0
          %779 = vmatpush1.msra.mxu0 %v565
          %780 = vmatprep.subr.mxu0 0.0
          %781 = vmatpush1.msra.mxu0 %v566
          %782 = vmatprep.subr.mxu0 0.0
          %783 = vmatpush1.msra.mxu0 %v567
          %784 = vmatprep.subr.mxu0 0.0
          %785 = vmatpush1.msra.mxu0 %v568
          %786 = vmatprep.subr.mxu0 0.0
          %787 = vmatpush1.msra.mxu0 0.0
          %788 = vmatprep.subr.mxu0 0.0
          %789 = vmatpush1.msra.mxu0 0.0
          %790 = vmatprep.subr.mxu0 0.0
          %791 = vmatpush1.msra.mxu0 0.0
          %792 = vmatprep.subr.mxu0 0.0
          %793 = vmatpush1.msra.mxu0 0.0
          %794 = vmatprep.subr.mxu0 0.0
          %795 = vmatpush1.msra.mxu0 0.0
          %796 = vmatprep.subr.mxu0 0.0
          %797 = vmatpush1.msra.mxu0 0.0
          %798 = vmatprep.subr.mxu0 0.0
          %799 = vmatpush1.msra.mxu0 0.0
          %800 = vmatprep.subr.mxu0 0.0
          %801 = vmatpush1.msra.mxu0 0.0
          %802 = vmatprep.subr.mxu0 0.0
          %803 = vmatpush1.msra.mxu0 0.0
          %804 = vmatprep.subr.mxu0 0.0
          %805 = vmatpush1.msra.mxu0 0.0
          %806 = vmatprep.subr.mxu0 0.0
          %807 = vmatpush1.msra.mxu0 0.0
          %808 = vmatprep.subr.mxu0 0.0
          %809 = vmatpush1.msra.mxu0 0.0
          %810 = vmatprep.subr.mxu0 0.0
          %811 = vmatpush1.msra.mxu0 0.0
          %812 = vmatprep.subr.mxu0 0.0
          %813 = vmatpush1.msra.mxu0 0.0
          %814 = vmatprep.subr.mxu0 0.0
          %815 = vmatpush1.msra.mxu0 0.0
          %816 = vmatprep.subr.mxu0 0.0
          %817 = vmatpush1.msra.mxu0 0.0
          %818 = vmatprep.subr.mxu0 0.0
          %819 = vmatpush1.msra.mxu0 0.0
          %820 = vmatprep.subr.mxu0 0.0
          %821 = vmatpush1.msra.mxu0 0.0
          %822 = vmatprep.subr.mxu0 0.0
          %823 = vmatpush1.msra.mxu0 0.0
          %824 = vmatprep.subr.mxu0 0.0
          %825 = vmatpush1.msra.mxu0 0.0
          %826 = vmatprep.subr.mxu0 0.0
          %827 = vmatpush1.msra.mxu0 0.0
          %828 = vmatprep.subr.mxu0 0.0
          %829 = vmatpush1.msra.mxu0 0.0
          %830 = vmatprep.subr.mxu0 0.0
          %831 = vmatpush1.msra.mxu0 0.0
          %832 = vmatprep.subr.mxu0 0.0
          %833 = vmatpush1.msra.mxu0 0.0
          %834 = vmatprep.subr.mxu0 0.0
          %835 = vmatpush1.msra.mxu0 0.0
          %836 = vmatprep.subr.mxu0 0.0
          %837 = vmatpush1.msra.mxu0 0.0
          %838 = vmatprep.subr.mxu0 0.0
          %839 = vmatpush1.msra.mxu0 0.0
          %840 = vmatprep.subr.mxu0 0.0
          %841 = vmatpush1.msra.mxu0 0.0
          %842 = vmatprep.mubr.f32.mxu0 0.0
          %843 = vmatmul.mubr.f32.gmra.mrb[0].mxu0 %v776
          %v844 = vpop.f32.mrb[0].mxu0
          %v845 = vadd.f32 0.0, %v844
          %v846 = vpop.f32.mrb[0].mxu0
          %847 = vdwg.mxu0
          %v848 = vadd.f32 %v772, %v845
          %v849 = vxor.u32 %v848, 2147483648
          %v850 = vmul.f32 %v849, 1.442695
          %v851 = vpow.pop %v850
          %v852 = vadd.f32 %v851, 1.0
          %v853 = vrcp.pop %v852
          %v854 = vmul.f32 1.0, %v853
          %v855 = vtanh.pop %v848
          %v856 = vmul.f32 %v854, %v764
          %858 = vrot.lane.b32.xlu0 %v855, 64
          %v859 = vpop.permute.xlu0 %858
          %v861 = vmul.f32 %v854, %v859
          %863 = vrot.lane.b32.xlu0 %v861, 32
          %v864 = vpop.permute.xlu0 %863
          %v866 = vadd.f32 %v856, %v864
          %v867 = vtanh.pop %v866
          %869 = vrot.lane.b32.xlu0 %v867, 64
          %v870 = vpop.permute.xlu0 %869
          %v872 = vmul.f32 %v854, %v870
          %s873 = scalar_lea.vmem [#allocation2], 24
          %v874 = vld [vmem:[%s873] sm:$0xff]
          %876 = vrot.lane.b32.xlu0 %v872, 32
          %v877 = vpop.permute.xlu0 %876
          %v878 = vsel %vm570, %v877, 0
          %880 = vmatprep.subr.mxu0 0.0
          %881 = vmatpush1.msra.mxu0 %v565
          %882 = vmatprep.subr.mxu0 0.0
          %883 = vmatpush1.msra.mxu0 %v566
          %884 = vmatprep.subr.mxu0 0.0
          %885 = vmatpush1.msra.mxu0 %v567
          %886 = vmatprep.subr.mxu0 0.0
          %887 = vmatpush1.msra.mxu0 %v568
          %888 = vmatprep.subr.mxu0 0.0
          %889 = vmatpush1.msra.mxu0 0.0
          %890 = vmatprep.subr.mxu0 0.0
          %891 = vmatpush1.msra.mxu0 0.0
          %892 = vmatprep.subr.mxu0 0.0
          %893 = vmatpush1.msra.mxu0 0.0
          %894 = vmatprep.subr.mxu0 0.0
          %895 = vmatpush1.msra.mxu0 0.0
          %896 = vmatprep.subr.mxu0 0.0
          %897 = vmatpush1.msra.mxu0 0.0
          %898 = vmatprep.subr.mxu0 0.0
          %899 = vmatpush1.msra.mxu0 0.0
          %900 = vmatprep.subr.mxu0 0.0
          %901 = vmatpush1.msra.mxu0 0.0
          %902 = vmatprep.subr.mxu0 0.0
          %903 = vmatpush1.msra.mxu0 0.0
          %904 = vmatprep.subr.mxu0 0.0
          %905 = vmatpush1.msra.mxu0 0.0
          %906 = vmatprep.subr.mxu0 0.0
          %907 = vmatpush1.msra.mxu0 0.0
          %908 = vmatprep.subr.mxu0 0.0
          %909 = vmatpush1.msra.mxu0 0.0
          %910 = vmatprep.subr.mxu0 0.0
          %911 = vmatpush1.msra.mxu0 0.0
          %912 = vmatprep.subr.mxu0 0.0
          %913 = vmatpush1.msra.mxu0 0.0
          %914 = vmatprep.subr.mxu0 0.0
          %915 = vmatpush1.msra.mxu0 0.0
          %916 = vmatprep.subr.mxu0 0.0
          %917 = vmatpush1.msra.mxu0 0.0
          %918 = vmatprep.subr.mxu0 0.0
          %919 = vmatpush1.msra.mxu0 0.0
          %920 = vmatprep.subr.mxu0 0.0
          %921 = vmatpush1.msra.mxu0 0.0
          %922 = vmatprep.subr.mxu0 0.0
          %923 = vmatpush1.msra.mxu0 0.0
          %924 = vmatprep.subr.mxu0 0.0
          %925 = vmatpush1.msra.mxu0 0.0
          %926 = vmatprep.subr.mxu0 0.0
          %927 = vmatpush1.msra.mxu0 0.0
          %928 = vmatprep.subr.mxu0 0.0
          %929 = vmatpush1.msra.mxu0 0.0
          %930 = vmatprep.subr.mxu0 0.0
          %931 = vmatpush1.msra.mxu0 0.0
          %932 = vmatprep.subr.mxu0 0.0
          %933 = vmatpush1.msra.mxu0 0.0
          %934 = vmatprep.subr.mxu0 0.0
          %935 = vmatpush1.msra.mxu0 0.0
          %936 = vmatprep.subr.mxu0 0.0
          %937 = vmatpush1.msra.mxu0 0.0
          %938 = vmatprep.subr.mxu0 0.0
          %939 = vmatpush1.msra.mxu0 0.0
          %940 = vmatprep.subr.mxu0 0.0
          %941 = vmatpush1.msra.mxu0 0.0
          %942 = vmatprep.subr.mxu0 0.0
          %943 = vmatpush1.msra.mxu0 0.0
          %944 = vmatprep.mubr.f32.mxu0 0.0
          %945 = vmatmul.mubr.f32.gmra.mrb[0].mxu0 %v878
          %v946 = vpop.f32.mrb[0].mxu0
          %v947 = vadd.f32 0.0, %v946
          %v948 = vpop.f32.mrb[0].mxu0
          %949 = vdwg.mxu0
          %v950 = vadd.f32 %v874, %v947
          %v951 = vxor.u32 %v950, 2147483648
          %v952 = vmul.f32 %v951, 1.442695
          %v953 = vpow.pop %v952
          %v954 = vadd.f32 %v953, 1.0
          %v955 = vrcp.pop %v954
          %v956 = vmul.f32 1.0, %v955
          %v957 = vtanh.pop %v950
          %v958 = vmul.f32 %v956, %v866
          %960 = vrot.lane.b32.xlu0 %v957, 64
          %v961 = vpop.permute.xlu0 %960
          %v963 = vmul.f32 %v956, %v961
          %965 = vrot.lane.b32.xlu0 %v963, 32
          %v966 = vpop.permute.xlu0 %965
          %v968 = vadd.f32 %v958, %v966
          %v969 = vtanh.pop %v968
          %971 = vrot.lane.b32.xlu0 %v969, 64
          %v972 = vpop.permute.xlu0 %971
          %v974 = vmul.f32 %v956, %v972
          %s975 = scalar_lea.vmem [#allocation2], 32
          %v976 = vld [vmem:[%s975] sm:$0xff]
          %978 = vrot.lane.b32.xlu0 %v974, 32
          %v979 = vpop.permute.xlu0 %978
          %v980 = vsel %vm570, %v979, 0
          %982 = vmatprep.subr.mxu0 0.0
          %983 = vmatpush1.msra.mxu0 %v565
          %984 = vmatprep.subr.mxu0 0.0
          %985 = vmatpush1.msra.mxu0 %v566
          %986 = vmatprep.subr.mxu0 0.0
          %987 = vmatpush1.msra.mxu0 %v567
          %988 = vmatprep.subr.mxu0 0.0
          %989 = vmatpush1.msra.mxu0 %v568
          %990 = vmatprep.subr.mxu0 0.0
          %991 = vmatpush1.msra.mxu0 0.0
          %992 = vmatprep.subr.mxu0 0.0
          %993 = vmatpush1.msra.mxu0 0.0
          %994 = vmatprep.subr.mxu0 0.0
          %995 = vmatpush1.msra.mxu0 0.0
          %996 = vmatprep.subr.mxu0 0.0
          %997 = vmatpush1.msra.mxu0 0.0
          %998 = vmatprep.subr.mxu0 0.0
          %999 = vmatpush1.msra.mxu0 0.0
          %1000 = vmatprep.subr.mxu0 0.0
          %1001 = vmatpush1.msra.mxu0 0.0
          %1002 = vmatprep.subr.mxu0 0.0
          %1003 = vmatpush1.msra.mxu0 0.0
          %1004 = vmatprep.subr.mxu0 0.0
          %1005 = vmatpush1.msra.mxu0 0.0
          %1006 = vmatprep.subr.mxu0 0.0
          %1007 = vmatpush1.msra.mxu0 0.0
          %1008 = vmatprep.subr.mxu0 0.0
          %1009 = vmatpush1.msra.mxu0 0.0
          %1010 = vmatprep.subr.mxu0 0.0
          %1011 = vmatpush1.msra.mxu0 0.0
          %1012 = vmatprep.subr.mxu0 0.0
          %1013 = vmatpush1.msra.mxu0 0.0
          %1014 = vmatprep.subr.mxu0 0.0
          %1015 = vmatpush1.msra.mxu0 0.0
          %1016 = vmatprep.subr.mxu0 0.0
          %1017 = vmatpush1.msra.mxu0 0.0
          %1018 = vmatprep.subr.mxu0 0.0
          %1019 = vmatpush1.msra.mxu0 0.0
          %1020 = vmatprep.subr.mxu0 0.0
          %1021 = vmatpush1.msra.mxu0 0.0
          %1022 = vmatprep.subr.mxu0 0.0
          %1023 = vmatpush1.msra.mxu0 0.0
          %1024 = vmatprep.subr.mxu0 0.0
          %1025 = vmatpush1.msra.mxu0 0.0
          %1026 = vmatprep.subr.mxu0 0.0
          %1027 = vmatpush1.msra.mxu0 0.0
          %1028 = vmatprep.subr.mxu0 0.0
          %1029 = vmatpush1.msra.mxu0 0.0
          %1030 = vmatprep.subr.mxu0 0.0
          %1031 = vmatpush1.msra.mxu0 0.0
          %1032 = vmatprep.subr.mxu0 0.0
          %1033 = vmatpush1.msra.mxu0 0.0
          %1034 = vmatprep.subr.mxu0 0.0
          %1035 = vmatpush1.msra.mxu0 0.0
          %1036 = vmatprep.subr.mxu0 0.0
          %1037 = vmatpush1.msra.mxu0 0.0
          %1038 = vmatprep.subr.mxu0 0.0
          %1039 = vmatpush1.msra.mxu0 0.0
          %1040 = vmatprep.subr.mxu0 0.0
          %1041 = vmatpush1.msra.mxu0 0.0
          %1042 = vmatprep.subr.mxu0 0.0
          %1043 = vmatpush1.msra.mxu0 0.0
          %1044 = vmatprep.subr.mxu0 0.0
          %1045 = vmatpush1.msra.mxu0 0.0
          %1046 = vmatprep.mubr.f32.mxu0 0.0
          %1047 = vmatmul.mubr.f32.gmra.mrb[0].mxu0 %v980
          %v1048 = vpop.f32.mrb[0].mxu0
          %v1049 = vadd.f32 0.0, %v1048
          %v1050 = vpop.f32.mrb[0].mxu0
          %1051 = vdwg.mxu0
          %v1052 = vadd.f32 %v976, %v1049
          %v1053 = vxor.u32 %v1052, 2147483648
          %v1054 = vmul.f32 %v1053, 1.442695
          %v1055 = vpow.pop %v1054
          %v1056 = vadd.f32 %v1055, 1.0
          %v1057 = vrcp.pop %v1056
          %v1058 = vmul.f32 1.0, %v1057
          %v1059 = vtanh.pop %v1052
          %v1060 = vmul.f32 %v1058, %v968
          %1062 = vrot.lane.b32.xlu0 %v1059, 64
          %v1063 = vpop.permute.xlu0 %1062
          %v1065 = vmul.f32 %v1058, %v1063
          %1067 = vrot.lane.b32.xlu0 %v1065, 32
          %v1068 = vpop.permute.xlu0 %1067
          %v1070 = vadd.f32 %v1060, %v1068
          %v1071 = vtanh.pop %v1070
          %1073 = vrot.lane.b32.xlu0 %v1071, 64
          %v1074 = vpop.permute.xlu0 %1073
          %v1076 = vmul.f32 %v1058, %v1074
          %s1077 = scalar_lea.vmem [#allocation2], 40
          %v1078 = vld [vmem:[%s1077] sm:$0xff]
          %1080 = vrot.lane.b32.xlu0 %v1076, 32
          %v1081 = vpop.permute.xlu0 %1080
          %v1082 = vsel %vm570, %v1081, 0
          %1084 = vmatprep.subr.mxu0 0.0
          %1085 = vmatpush1.msra.mxu0 %v565
          %1086 = vmatprep.subr.mxu0 0.0
          %1087 = vmatpush1.msra.mxu0 %v566
          %1088 = vmatprep.subr.mxu0 0.0
          %1089 = vmatpush1.msra.mxu0 %v567
          %1090 = vmatprep.subr.mxu0 0.0
          %1091 = vmatpush1.msra.mxu0 %v568
          %1092 = vmatprep.subr.mxu0 0.0
          %1093 = vmatpush1.msra.mxu0 0.0
          %1094 = vmatprep.subr.mxu0 0.0
          %1095 = vmatpush1.msra.mxu0 0.0
          %1096 = vmatprep.subr.mxu0 0.0
          %1097 = vmatpush1.msra.mxu0 0.0
          %1098 = vmatprep.subr.mxu0 0.0
          %1099 = vmatpush1.msra.mxu0 0.0
          %1100 = vmatprep.subr.mxu0 0.0
          %1101 = vmatpush1.msra.mxu0 0.0
          %1102 = vmatprep.subr.mxu0 0.0
          %1103 = vmatpush1.msra.mxu0 0.0
          %1104 = vmatprep.subr.mxu0 0.0
          %1105 = vmatpush1.msra.mxu0 0.0
          %1106 = vmatprep.subr.mxu0 0.0
          %1107 = vmatpush1.msra.mxu0 0.0
          %1108 = vmatprep.subr.mxu0 0.0
          %1109 = vmatpush1.msra.mxu0 0.0
          %1110 = vmatprep.subr.mxu0 0.0
          %1111 = vmatpush1.msra.mxu0 0.0
          %1112 = vmatprep.subr.mxu0 0.0
          %1113 = vmatpush1.msra.mxu0 0.0
          %1114 = vmatprep.subr.mxu0 0.0
          %1115 = vmatpush1.msra.mxu0 0.0
          %1116 = vmatprep.subr.mxu0 0.0
          %1117 = vmatpush1.msra.mxu0 0.0
          %1118 = vmatprep.subr.mxu0 0.0
          %1119 = vmatpush1.msra.mxu0 0.0
          %1120 = vmatprep.subr.mxu0 0.0
          %1121 = vmatpush1.msra.mxu0 0.0
          %1122 = vmatprep.subr.mxu0 0.0
          %1123 = vmatpush1.msra.mxu0 0.0
          %1124 = vmatprep.subr.mxu0 0.0
          %1125 = vmatpush1.msra.mxu0 0.0
          %1126 = vmatprep.subr.mxu0 0.0
          %1127 = vmatpush1.msra.mxu0 0.0
          %1128 = vmatprep.subr.mxu0 0.0
          %1129 = vmatpush1.msra.mxu0 0.0
          %1130 = vmatprep.subr.mxu0 0.0
          %1131 = vmatpush1.msra.mxu0 0.0
          %1132 = vmatprep.subr.mxu0 0.0
          %1133 = vmatpush1.msra.mxu0 0.0
          %1134 = vmatprep.subr.mxu0 0.0
          %1135 = vmatpush1.msra.mxu0 0.0
          %1136 = vmatprep.subr.mxu0 0.0
          %1137 = vmatpush1.msra.mxu0 0.0
          %1138 = vmatprep.subr.mxu0 0.0
          %1139 = vmatpush1.msra.mxu0 0.0
          %1140 = vmatprep.subr.mxu0 0.0
          %1141 = vmatpush1.msra.mxu0 0.0
          %1142 = vmatprep.subr.mxu0 0.0
          %1143 = vmatpush1.msra.mxu0 0.0
          %1144 = vmatprep.subr.mxu0 0.0
          %1145 = vmatpush1.msra.mxu0 0.0
          %1146 = vmatprep.subr.mxu0 0.0
          %1147 = vmatpush1.msra.mxu0 0.0
          %1148 = vmatprep.mubr.f32.mxu0 0.0
          %1149 = vmatmul.mubr.f32.gmra.mrb[0].mxu0 %v1082
          %v1150 = vpop.f32.mrb[0].mxu0
          %v1151 = vadd.f32 0.0, %v1150
          %v1152 = vpop.f32.mrb[0].mxu0
          %1153 = vdwg.mxu0
          %v1154 = vadd.f32 %v1078, %v1151
          %v1155 = vxor.u32 %v1154, 2147483648
          %v1156 = vmul.f32 %v1155, 1.442695
          %v1157 = vpow.pop %v1156
          %v1158 = vadd.f32 %v1157, 1.0
          %v1159 = vrcp.pop %v1158
          %v1160 = vmul.f32 1.0, %v1159
          %v1161 = vtanh.pop %v1154
          %v1162 = vmul.f32 %v1160, %v1070
          %1164 = vrot.lane.b32.xlu0 %v1161, 64
          %v1165 = vpop.permute.xlu0 %1164
          %v1167 = vmul.f32 %v1160, %v1165
          %1169 = vrot.lane.b32.xlu0 %v1167, 32
          %v1170 = vpop.permute.xlu0 %1169
          %v1172 = vadd.f32 %v1162, %v1170
          %v1173 = vtanh.pop %v1172
          %1175 = vrot.lane.b32.xlu0 %v1173, 64
          %v1176 = vpop.permute.xlu0 %1175
          %v1178 = vmul.f32 %v1160, %v1176
          %s1179 = scalar_lea.vmem [#allocation2], 48
          %v1180 = vld [vmem:[%s1179] sm:$0xff]
          %1182 = vrot.lane.b32.xlu0 %v1178, 32
          %v1183 = vpop.permute.xlu0 %1182
          %v1184 = vsel %vm570, %v1183, 0
          %1186 = vmatprep.subr.mxu0 0.0
          %1187 = vmatpush1.msra.mxu0 %v565
          %1188 = vmatprep.subr.mxu0 0.0
          %1189 = vmatpush1.msra.mxu0 %v566
          %1190 = vmatprep.subr.mxu0 0.0
          %1191 = vmatpush1.msra.mxu0 %v567
          %1192 = vmatprep.subr.mxu0 0.0
          %1193 = vmatpush1.msra.mxu0 %v568
          %1194 = vmatprep.subr.mxu0 0.0
          %1195 = vmatpush1.msra.mxu0 0.0
          %1196 = vmatprep.subr.mxu0 0.0
          %1197 = vmatpush1.msra.mxu0 0.0
          %1198 = vmatprep.subr.mxu0 0.0
          %1199 = vmatpush1.msra.mxu0 0.0
          %1200 = vmatprep.subr.mxu0 0.0
          %1201 = vmatpush1.msra.mxu0 0.0
          %1202 = vmatprep.subr.mxu0 0.0
          %1203 = vmatpush1.msra.mxu0 0.0
          %1204 = vmatprep.subr.mxu0 0.0
          %1205 = vmatpush1.msra.mxu0 0.0
          %1206 = vmatprep.subr.mxu0 0.0
          %1207 = vmatpush1.msra.mxu0 0.0
          %1208 = vmatprep.subr.mxu0 0.0
          %1209 = vmatpush1.msra.mxu0 0.0
          %1210 = vmatprep.subr.mxu0 0.0
          %1211 = vmatpush1.msra.mxu0 0.0
          %1212 = vmatprep.subr.mxu0 0.0
          %1213 = vmatpush1.msra.mxu0 0.0
          %1214 = vmatprep.subr.mxu0 0.0
          %1215 = vmatpush1.msra.mxu0 0.0
          %1216 = vmatprep.subr.mxu0 0.0
          %1217 = vmatpush1.msra.mxu0 0.0
          %1218 = vmatprep.subr.mxu0 0.0
          %1219 = vmatpush1.msra.mxu0 0.0
          %1220 = vmatprep.subr.mxu0 0.0
          %1221 = vmatpush1.msra.mxu0 0.0
          %1222 = vmatprep.subr.mxu0 0.0
          %1223 = vmatpush1.msra.mxu0 0.0
          %1224 = vmatprep.subr.mxu0 0.0
          %1225 = vmatpush1.msra.mxu0 0.0
          %1226 = vmatprep.subr.mxu0 0.0
          %1227 = vmatpush1.msra.mxu0 0.0
          %1228 = vmatprep.subr.mxu0 0.0
          %1229 = vmatpush1.msra.mxu0 0.0
          %1230 = vmatprep.subr.mxu0 0.0
          %1231 = vmatpush1.msra.mxu0 0.0
          %1232 = vmatprep.subr.mxu0 0.0
          %1233 = vmatpush1.msra.mxu0 0.0
          %1234 = vmatprep.subr.mxu0 0.0
          %1235 = vmatpush1.msra.mxu0 0.0
          %1236 = vmatprep.subr.mxu0 0.0
          %1237 = vmatpush1.msra.mxu0 0.0
          %1238 = vmatprep.subr.mxu0 0.0
          %1239 = vmatpush1.msra.mxu0 0.0
          %1240 = vmatprep.subr.mxu0 0.0
          %1241 = vmatpush1.msra.mxu0 0.0
          %1242 = vmatprep.subr.mxu0 0.0
          %1243 = vmatpush1.msra.mxu0 0.0
          %1244 = vmatprep.subr.mxu0 0.0
          %1245 = vmatpush1.msra.mxu0 0.0
          %1246 = vmatprep.subr.mxu0 0.0
          %1247 = vmatpush1.msra.mxu0 0.0
          %1248 = vmatprep.subr.mxu0 0.0
          %1249 = vmatpush1.msra.mxu0 0.0
          %1250 = vmatprep.mubr.f32.mxu0 0.0
          %1251 = vmatmul.mubr.f32.gmra.mrb[0].mxu0 %v1184
          %v1252 = vpop.f32.mrb[0].mxu0
          %v1253 = vadd.f32 0.0, %v1252
          %v1254 = vpop.f32.mrb[0].mxu0
          %1255 = vdwg.mxu0
          %v1256 = vadd.f32 %v1180, %v1253
          %v1257 = vxor.u32 %v1256, 2147483648
          %v1258 = vmul.f32 %v1257, 1.442695
          %v1259 = vpow.pop %v1258
          %v1260 = vadd.f32 %v1259, 1.0
          %v1261 = vrcp.pop %v1260
          %v1262 = vmul.f32 1.0, %v1261
          %v1263 = vtanh.pop %v1256
          %v1264 = vmul.f32 %v1262, %v1172
          %1266 = vrot.lane.b32.xlu0 %v1263, 64
          %v1267 = vpop.permute.xlu0 %1266
          %v1269 = vmul.f32 %v1262, %v1267
          %1271 = vrot.lane.b32.xlu0 %v1269, 32
          %v1272 = vpop.permute.xlu0 %1271
          %v1274 = vadd.f32 %v1264, %v1272
          %v1275 = vtanh.pop %v1274
          %1277 = vrot.lane.b32.xlu0 %v1275, 64
          %v1278 = vpop.permute.xlu0 %1277
          %v1280 = vmul.f32 %v1262, %v1278
          %s1281 = scalar_lea.vmem [#allocation2], 56
          %v1282 = vld [vmem:[%s1281] sm:$0xff]
          %1284 = vrot.lane.b32.xlu0 %v1280, 32
          %v1285 = vpop.permute.xlu0 %1284
          %v1286 = vsel %vm570, %v1285, 0
          %1288 = vmatprep.subr.mxu0 0.0
          %1289 = vmatpush1.msra.mxu0 %v565
          %1290 = vmatprep.subr.mxu0 0.0
          %1291 = vmatpush1.msra.mxu0 %v566
          %1292 = vmatprep.subr.mxu0 0.0
          %1293 = vmatpush1.msra.mxu0 %v567
          %1294 = vmatprep.subr.mxu0 0.0
          %1295 = vmatpush1.msra.mxu0 %v568
          %1296 = vmatprep.subr.mxu0 0.0
          %1297 = vmatpush1.msra.mxu0 0.0
          %1298 = vmatprep.subr.mxu0 0.0
          %1299 = vmatpush1.msra.mxu0 0.0
          %1300 = vmatprep.subr.mxu0 0.0
          %1301 = vmatpush1.msra.mxu0 0.0
          %1302 = vmatprep.subr.mxu0 0.0
          %1303 = vmatpush1.msra.mxu0 0.0
          %1304 = vmatprep.subr.mxu0 0.0
          %1305 = vmatpush1.msra.mxu0 0.0
          %1306 = vmatprep.subr.mxu0 0.0
          %1307 = vmatpush1.msra.mxu0 0.0
          %1308 = vmatprep.subr.mxu0 0.0
          %1309 = vmatpush1.msra.mxu0 0.0
          %1310 = vmatprep.subr.mxu0 0.0
          %1311 = vmatpush1.msra.mxu0 0.0
          %1312 = vmatprep.subr.mxu0 0.0
          %1313 = vmatpush1.msra.mxu0 0.0
          %1314 = vmatprep.subr.mxu0 0.0
          %1315 = vmatpush1.msra.mxu0 0.0
          %1316 = vmatprep.subr.mxu0 0.0
          %1317 = vmatpush1.msra.mxu0 0.0
          %1318 = vmatprep.subr.mxu0 0.0
          %1319 = vmatpush1.msra.mxu0 0.0
          %1320 = vmatprep.subr.mxu0 0.0
          %1321 = vmatpush1.msra.mxu0 0.0
          %1322 = vmatprep.subr.mxu0 0.0
          %1323 = vmatpush1.msra.mxu0 0.0
          %1324 = vmatprep.subr.mxu0 0.0
          %1325 = vmatpush1.msra.mxu0 0.0
          %1326 = vmatprep.subr.mxu0 0.0
          %1327 = vmatpush1.msra.mxu0 0.0
          %1328 = vmatprep.subr.mxu0 0.0
          %1329 = vmatpush1.msra.mxu0 0.0
          %1330 = vmatprep.subr.mxu0 0.0
          %1331 = vmatpush1.msra.mxu0 0.0
          %1332 = vmatprep.subr.mxu0 0.0
          %1333 = vmatpush1.msra.mxu0 0.0
          %1334 = vmatprep.subr.mxu0 0.0
          %1335 = vmatpush1.msra.mxu0 0.0
          %1336 = vmatprep.subr.mxu0 0.0
          %1337 = vmatpush1.msra.mxu0 0.0
          %1338 = vmatprep.subr.mxu0 0.0
          %1339 = vmatpush1.msra.mxu0 0.0
          %1340 = vmatprep.subr.mxu0 0.0
          %1341 = vmatpush1.msra.mxu0 0.0
          %1342 = vmatprep.subr.mxu0 0.0
          %1343 = vmatpush1.msra.mxu0 0.0
          %1344 = vmatprep.subr.mxu0 0.0
          %1345 = vmatpush1.msra.mxu0 0.0
          %1346 = vmatprep.subr.mxu0 0.0
          %1347 = vmatpush1.msra.mxu0 0.0
          %1348 = vmatprep.subr.mxu0 0.0
          %1349 = vmatpush1.msra.mxu0 0.0
          %1350 = vmatprep.subr.mxu0 0.0
          %1351 = vmatpush1.msra.mxu0 0.0
          %1352 = vmatprep.mubr.f32.mxu0 0.0
          %1353 = vmatmul.mubr.f32.gmra.mrb[0].mxu0 %v1286
          %v1354 = vpop.f32.mrb[0].mxu0
          %v1355 = vadd.f32 0.0, %v1354
          %v1356 = vpop.f32.mrb[0].mxu0
          %1357 = vdwg.mxu0
          %v1358 = vadd.f32 %v1282, %v1355
          %v1359 = vxor.u32 %v1358, 2147483648
          %v1360 = vmul.f32 %v1359, 1.442695
          %v1361 = vpow.pop %v1360
          %v1362 = vadd.f32 %v1361, 1.0
          %v1363 = vrcp.pop %v1362
          %v1364 = vmul.f32 1.0, %v1363
          %v1365 = vtanh.pop %v1358
          %v1366 = vmul.f32 %v1364, %v1274
          %1368 = vrot.lane.b32.xlu0 %v1365, 64
          %v1369 = vpop.permute.xlu0 %1368
          %v1371 = vmul.f32 %v1364, %v1369
          %1373 = vrot.lane.b32.xlu0 %v1371, 32
          %v1374 = vpop.permute.xlu0 %1373
          %v1376 = vadd.f32 %v1366, %v1374
          %v1377 = vtanh.pop %v1376
          %1379 = vrot.lane.b32.xlu0 %v1377, 64
          %v1380 = vpop.permute.xlu0 %1379
          %v1382 = vmul.f32 %v1364, %v1380
          %s1383 = scalar_lea.vmem [#allocation2], 64
          %v1384 = vld [vmem:[%s1383] sm:$0xff]
          %1386 = vrot.lane.b32.xlu0 %v1382, 32
          %v1387 = vpop.permute.xlu0 %1386
          %v1388 = vsel %vm570, %v1387, 0
          %1390 = vmatprep.subr.mxu0 0.0
          %1391 = vmatpush1.msra.mxu0 %v565
          %1392 = vmatprep.subr.mxu0 0.0
          %1393 = vmatpush1.msra.mxu0 %v566
          %1394 = vmatprep.subr.mxu0 0.0
          %1395 = vmatpush1.msra.mxu0 %v567
          %1396 = vmatprep.subr.mxu0 0.0
          %1397 = vmatpush1.msra.mxu0 %v568
          %1398 = vmatprep.subr.mxu0 0.0
          %1399 = vmatpush1.msra.mxu0 0.0
          %1400 = vmatprep.subr.mxu0 0.0
          %1401 = vmatpush1.msra.mxu0 0.0
          %1402 = vmatprep.subr.mxu0 0.0
          %1403 = vmatpush1.msra.mxu0 0.0
          %1404 = vmatprep.subr.mxu0 0.0
          %1405 = vmatpush1.msra.mxu0 0.0
          %1406 = vmatprep.subr.mxu0 0.0
          %1407 = vmatpush1.msra.mxu0 0.0
          %1408 = vmatprep.subr.mxu0 0.0
          %1409 = vmatpush1.msra.mxu0 0.0
          %1410 = vmatprep.subr.mxu0 0.0
          %1411 = vmatpush1.msra.mxu0 0.0
          %1412 = vmatprep.subr.mxu0 0.0
          %1413 = vmatpush1.msra.mxu0 0.0
          %1414 = vmatprep.subr.mxu0 0.0
          %1415 = vmatpush1.msra.mxu0 0.0
          %1416 = vmatprep.subr.mxu0 0.0
          %1417 = vmatpush1.msra.mxu0 0.0
          %1418 = vmatprep.subr.mxu0 0.0
          %1419 = vmatpush1.msra.mxu0 0.0
          %1420 = vmatprep.subr.mxu0 0.0
          %1421 = vmatpush1.msra.mxu0 0.0
          %1422 = vmatprep.subr.mxu0 0.0
          %1423 = vmatpush1.msra.mxu0 0.0
          %1424 = vmatprep.subr.mxu0 0.0
          %1425 = vmatpush1.msra.mxu0 0.0
          %1426 = vmatprep.subr.mxu0 0.0
          %1427 = vmatpush1.msra.mxu0 0.0
          %1428 = vmatprep.subr.mxu0 0.0
          %1429 = vmatpush1.msra.mxu0 0.0
          %1430 = vmatprep.subr.mxu0 0.0
          %1431 = vmatpush1.msra.mxu0 0.0
          %1432 = vmatprep.subr.mxu0 0.0
          %1433 = vmatpush1.msra.mxu0 0.0
          %1434 = vmatprep.subr.mxu0 0.0
          %1435 = vmatpush1.msra.mxu0 0.0
          %1436 = vmatprep.subr.mxu0 0.0
          %1437 = vmatpush1.msra.mxu0 0.0
          %1438 = vmatprep.subr.mxu0 0.0
          %1439 = vmatpush1.msra.mxu0 0.0
          %1440 = vmatprep.subr.mxu0 0.0
          %1441 = vmatpush1.msra.mxu0 0.0
          %1442 = vmatprep.subr.mxu0 0.0
          %1443 = vmatpush1.msra.mxu0 0.0
          %1444 = vmatprep.subr.mxu0 0.0
          %1445 = vmatpush1.msra.mxu0 0.0
          %1446 = vmatprep.subr.mxu0 0.0
          %1447 = vmatpush1.msra.mxu0 0.0
          %1448 = vmatprep.subr.mxu0 0.0
          %1449 = vmatpush1.msra.mxu0 0.0
          %1450 = vmatprep.subr.mxu0 0.0
          %1451 = vmatpush1.msra.mxu0 0.0
          %1452 = vmatprep.subr.mxu0 0.0
          %1453 = vmatpush1.msra.mxu0 0.0
          %1454 = vmatprep.mubr.f32.mxu0 0.0
          %1455 = vmatmul.mubr.f32.gmra.mrb[0].mxu0 %v1388
          %v1456 = vpop.f32.mrb[0].mxu0
          %v1457 = vadd.f32 0.0, %v1456
          %v1458 = vpop.f32.mrb[0].mxu0
          %1459 = vdwg.mxu0
          %v1460 = vadd.f32 %v1384, %v1457
          %v1461 = vxor.u32 %v1460, 2147483648
          %v1462 = vmul.f32 %v1461, 1.442695
          %v1463 = vpow.pop %v1462
          %v1464 = vadd.f32 %v1463, 1.0
          %v1465 = vrcp.pop %v1464
          %v1466 = vmul.f32 1.0, %v1465
          %v1467 = vtanh.pop %v1460
          %v1468 = vmul.f32 %v1466, %v1376
          %1470 = vrot.lane.b32.xlu0 %v1467, 64
          %v1471 = vpop.permute.xlu0 %1470
          %v1473 = vmul.f32 %v1466, %v1471
          %1475 = vrot.lane.b32.xlu0 %v1473, 32
          %v1476 = vpop.permute.xlu0 %1475
          %v1478 = vadd.f32 %v1468, %v1476
          %v1479 = vtanh.pop %v1478
          %1481 = vrot.lane.b32.xlu0 %v1479, 64
          %v1482 = vpop.permute.xlu0 %1481
          %v1484 = vmul.f32 %v1466, %v1482
          %s1485 = scalar_lea.vmem [#allocation2], 72
          %v1486 = vld [vmem:[%s1485] sm:$0xff]
          %1488 = vrot.lane.b32.xlu0 %v1484, 32
          %v1489 = vpop.permute.xlu0 %1488
          %v1490 = vsel %vm570, %v1489, 0
          %1492 = vmatprep.subr.mxu0 0.0
          %1493 = vmatpush1.msra.mxu0 %v565
          %1494 = vmatprep.subr.mxu0 0.0
          %1495 = vmatpush1.msra.mxu0 %v566
          %1496 = vmatprep.subr.mxu0 0.0
          %1497 = vmatpush1.msra.mxu0 %v567
          %1498 = vmatprep.subr.mxu0 0.0
          %1499 = vmatpush1.msra.mxu0 %v568
          %1500 = vmatprep.subr.mxu0 0.0
          %1501 = vmatpush1.msra.mxu0 0.0
          %1502 = vmatprep.subr.mxu0 0.0
          %1503 = vmatpush1.msra.mxu0 0.0
          %1504 = vmatprep.subr.mxu0 0.0
          %1505 = vmatpush1.msra.mxu0 0.0
          %1506 = vmatprep.subr.mxu0 0.0
          %1507 = vmatpush1.msra.mxu0 0.0
          %1508 = vmatprep.subr.mxu0 0.0
          %1509 = vmatpush1.msra.mxu0 0.0
          %1510 = vmatprep.subr.mxu0 0.0
          %1511 = vmatpush1.msra.mxu0 0.0
          %1512 = vmatprep.subr.mxu0 0.0
          %1513 = vmatpush1.msra.mxu0 0.0
          %1514 = vmatprep.subr.mxu0 0.0
          %1515 = vmatpush1.msra.mxu0 0.0
          %1516 = vmatprep.subr.mxu0 0.0
          %1517 = vmatpush1.msra.mxu0 0.0
          %1518 = vmatprep.subr.mxu0 0.0
          %1519 = vmatpush1.msra.mxu0 0.0
          %1520 = vmatprep.subr.mxu0 0.0
          %1521 = vmatpush1.msra.mxu0 0.0
          %1522 = vmatprep.subr.mxu0 0.0
          %1523 = vmatpush1.msra.mxu0 0.0
          %1524 = vmatprep.subr.mxu0 0.0
          %1525 = vmatpush1.msra.mxu0 0.0
          %1526 = vmatprep.subr.mxu0 0.0
          %1527 = vmatpush1.msra.mxu0 0.0
          %1528 = vmatprep.subr.mxu0 0.0
          %1529 = vmatpush1.msra.mxu0 0.0
          %1530 = vmatprep.subr.mxu0 0.0
          %1531 = vmatpush1.msra.mxu0 0.0
          %1532 = vmatprep.subr.mxu0 0.0
          %1533 = vmatpush1.msra.mxu0 0.0
          %1534 = vmatprep.subr.mxu0 0.0
          %1535 = vmatpush1.msra.mxu0 0.0
          %1536 = vmatprep.subr.mxu0 0.0
          %1537 = vmatpush1.msra.mxu0 0.0
          %1538 = vmatprep.subr.mxu0 0.0
          %1539 = vmatpush1.msra.mxu0 0.0
          %1540 = vmatprep.subr.mxu0 0.0
          %1541 = vmatpush1.msra.mxu0 0.0
          %1542 = vmatprep.subr.mxu0 0.0
          %1543 = vmatpush1.msra.mxu0 0.0
          %1544 = vmatprep.subr.mxu0 0.0
          %1545 = vmatpush1.msra.mxu0 0.0
          %1546 = vmatprep.subr.mxu0 0.0
          %1547 = vmatpush1.msra.mxu0 0.0
          %1548 = vmatprep.subr.mxu0 0.0
          %1549 = vmatpush1.msra.mxu0 0.0
          %1550 = vmatprep.subr.mxu0 0.0
          %1551 = vmatpush1.msra.mxu0 0.0
          %1552 = vmatprep.subr.mxu0 0.0
          %1553 = vmatpush1.msra.mxu0 0.0
          %1554 = vmatprep.subr.mxu0 0.0
          %1555 = vmatpush1.msra.mxu0 0.0
          %1556 = vmatprep.mubr.f32.mxu0 0.0
          %1557 = vmatmul.mubr.f32.gmra.mrb[0].mxu0 %v1490
          %v1558 = vpop.f32.mrb[0].mxu0
          %v1559 = vadd.f32 0.0, %v1558
          %v1560 = vpop.f32.mrb[0].mxu0
          %1561 = vdwg.mxu0
          %v1562 = vadd.f32 %v1486, %v1559
          %v1563 = vxor.u32 %v1562, 2147483648
          %v1564 = vmul.f32 %v1563, 1.442695
          %v1565 = vpow.pop %v1564
          %v1566 = vadd.f32 %v1565, 1.0
          %v1567 = vrcp.pop %v1566
          %v1568 = vmul.f32 1.0, %v1567
          %v1569 = vtanh.pop %v1562
          %v1570 = vmul.f32 %v1568, %v1478
          %1572 = vrot.lane.b32.xlu0 %v1569, 64
          %v1573 = vpop.permute.xlu0 %1572
          %v1575 = vmul.f32 %v1568, %v1573
          %1577 = vrot.lane.b32.xlu0 %v1575, 32
          %v1578 = vpop.permute.xlu0 %1577
          %v1580 = vadd.f32 %v1570, %v1578
          %v1581 = vtanh.pop %v1580
          %1583 = vrot.lane.b32.xlu0 %v1581, 64
          %v1584 = vpop.permute.xlu0 %1583
          %v1586 = vmul.f32 %v1568, %v1584
          %s1587 = scalar_lea.vmem [#allocation2], 80
          %v1588 = vld [vmem:[%s1587] sm:$0xff]
          %1590 = vrot.lane.b32.xlu0 %v1586, 32
          %v1591 = vpop.permute.xlu0 %1590
          %v1592 = vsel %vm570, %v1591, 0
          %1594 = vmatprep.subr.mxu0 0.0
          %1595 = vmatpush1.msra.mxu0 %v565
          %1596 = vmatprep.subr.mxu0 0.0
          %1597 = vmatpush1.msra.mxu0 %v566
          %1598 = vmatprep.subr.mxu0 0.0
          %1599 = vmatpush1.msra.mxu0 %v567
          %1600 = vmatprep.subr.mxu0 0.0
          %1601 = vmatpush1.msra.mxu0 %v568
          %1602 = vmatprep.subr.mxu0 0.0
          %1603 = vmatpush1.msra.mxu0 0.0
          %1604 = vmatprep.subr.mxu0 0.0
          %1605 = vmatpush1.msra.mxu0 0.0
          %1606 = vmatprep.subr.mxu0 0.0
          %1607 = vmatpush1.msra.mxu0 0.0
          %1608 = vmatprep.subr.mxu0 0.0
          %1609 = vmatpush1.msra.mxu0 0.0
          %1610 = vmatprep.subr.mxu0 0.0
          %1611 = vmatpush1.msra.mxu0 0.0
          %1612 = vmatprep.subr.mxu0 0.0
          %1613 = vmatpush1.msra.mxu0 0.0
          %1614 = vmatprep.subr.mxu0 0.0
          %1615 = vmatpush1.msra.mxu0 0.0
          %1616 = vmatprep.subr.mxu0 0.0
          %1617 = vmatpush1.msra.mxu0 0.0
          %1618 = vmatprep.subr.mxu0 0.0
          %1619 = vmatpush1.msra.mxu0 0.0
          %1620 = vmatprep.subr.mxu0 0.0
          %1621 = vmatpush1.msra.mxu0 0.0
          %1622 = vmatprep.subr.mxu0 0.0
          %1623 = vmatpush1.msra.mxu0 0.0
          %1624 = vmatprep.subr.mxu0 0.0
          %1625 = vmatpush1.msra.mxu0 0.0
          %1626 = vmatprep.subr.mxu0 0.0
          %1627 = vmatpush1.msra.mxu0 0.0
          %1628 = vmatprep.subr.mxu0 0.0
          %1629 = vmatpush1.msra.mxu0 0.0
          %1630 = vmatprep.subr.mxu0 0.0
          %1631 = vmatpush1.msra.mxu0 0.0
          %1632 = vmatprep.subr.mxu0 0.0
          %1633 = vmatpush1.msra.mxu0 0.0
          %1634 = vmatprep.subr.mxu0 0.0
          %1635 = vmatpush1.msra.mxu0 0.0
          %1636 = vmatprep.subr.mxu0 0.0
          %1637 = vmatpush1.msra.mxu0 0.0
          %1638 = vmatprep.subr.mxu0 0.0
          %1639 = vmatpush1.msra.mxu0 0.0
          %1640 = vmatprep.subr.mxu0 0.0
          %1641 = vmatpush1.msra.mxu0 0.0
          %1642 = vmatprep.subr.mxu0 0.0
          %1643 = vmatpush1.msra.mxu0 0.0
          %1644 = vmatprep.subr.mxu0 0.0
          %1645 = vmatpush1.msra.mxu0 0.0
          %1646 = vmatprep.subr.mxu0 0.0
          %1647 = vmatpush1.msra.mxu0 0.0
          %1648 = vmatprep.subr.mxu0 0.0
          %1649 = vmatpush1.msra.mxu0 0.0
          %1650 = vmatprep.subr.mxu0 0.0
          %1651 = vmatpush1.msra.mxu0 0.0
          %1652 = vmatprep.subr.mxu0 0.0
          %1653 = vmatpush1.msra.mxu0 0.0
          %1654 = vmatprep.subr.mxu0 0.0
          %1655 = vmatpush1.msra.mxu0 0.0
          %1656 = vmatprep.subr.mxu0 0.0
          %1657 = vmatpush1.msra.mxu0 0.0
          %1658 = vmatprep.mubr.f32.mxu0 0.0
          %1659 = vmatmul.mubr.f32.gmra.mrb[0].mxu0 %v1592
          %v1660 = vpop.f32.mrb[0].mxu0
          %v1661 = vadd.f32 0.0, %v1660
          %v1662 = vpop.f32.mrb[0].mxu0
          %1663 = vdwg.mxu0
          %v1664 = vadd.f32 %v1588, %v1661
          %v1665 = vxor.u32 %v1664, 2147483648
          %v1666 = vmul.f32 %v1665, 1.442695
          %v1667 = vpow.pop %v1666
          %v1668 = vadd.f32 %v1667, 1.0
          %v1669 = vrcp.pop %v1668
          %v1670 = vmul.f32 1.0, %v1669
          %v1671 = vtanh.pop %v1664
          %v1672 = vmul.f32 %v1670, %v1580
          %1674 = vrot.lane.b32.xlu0 %v1671, 64
          %v1675 = vpop.permute.xlu0 %1674
          %v1677 = vmul.f32 %v1670, %v1675
          %1679 = vrot.lane.b32.xlu0 %v1677, 32
          %v1680 = vpop.permute.xlu0 %1679
          %v1682 = vadd.f32 %v1672, %v1680
          %v1683 = vtanh.pop %v1682
          %1685 = vrot.lane.b32.xlu0 %v1683, 64
          %v1686 = vpop.permute.xlu0 %1685
          %v1688 = vmul.f32 %v1670, %v1686
          %s1689 = scalar_lea.vmem [#allocation2], 88
          %v1690 = vld [vmem:[%s1689] sm:$0xff]
          %1692 = vrot.lane.b32.xlu0 %v1688, 32
          %v1693 = vpop.permute.xlu0 %1692
          %v1694 = vsel %vm570, %v1693, 0
          %1696 = vmatprep.subr.mxu0 0.0
          %1697 = vmatpush1.msra.mxu0 %v565
          %1698 = vmatprep.subr.mxu0 0.0
          %1699 = vmatpush1.msra.mxu0 %v566
          %1700 = vmatprep.subr.mxu0 0.0
          %1701 = vmatpush1.msra.mxu0 %v567
          %1702 = vmatprep.subr.mxu0 0.0
          %1703 = vmatpush1.msra.mxu0 %v568
          %1704 = vmatprep.subr.mxu0 0.0
          %1705 = vmatpush1.msra.mxu0 0.0
          %1706 = vmatprep.subr.mxu0 0.0
          %1707 = vmatpush1.msra.mxu0 0.0
          %1708 = vmatprep.subr.mxu0 0.0
          %1709 = vmatpush1.msra.mxu0 0.0
          %1710 = vmatprep.subr.mxu0 0.0
          %1711 = vmatpush1.msra.mxu0 0.0
          %1712 = vmatprep.subr.mxu0 0.0
          %1713 = vmatpush1.msra.mxu0 0.0
          %1714 = vmatprep.subr.mxu0 0.0
          %1715 = vmatpush1.msra.mxu0 0.0
          %1716 = vmatprep.subr.mxu0 0.0
          %1717 = vmatpush1.msra.mxu0 0.0
          %1718 = vmatprep.subr.mxu0 0.0
          %1719 = vmatpush1.msra.mxu0 0.0
          %1720 = vmatprep.subr.mxu0 0.0
          %1721 = vmatpush1.msra.mxu0 0.0
          %1722 = vmatprep.subr.mxu0 0.0
          %1723 = vmatpush1.msra.mxu0 0.0
          %1724 = vmatprep.subr.mxu0 0.0
          %1725 = vmatpush1.msra.mxu0 0.0
          %1726 = vmatprep.subr.mxu0 0.0
          %1727 = vmatpush1.msra.mxu0 0.0
          %1728 = vmatprep.subr.mxu0 0.0
          %1729 = vmatpush1.msra.mxu0 0.0
          %1730 = vmatprep.subr.mxu0 0.0
          %1731 = vmatpush1.msra.mxu0 0.0
          %1732 = vmatprep.subr.mxu0 0.0
          %1733 = vmatpush1.msra.mxu0 0.0
          %1734 = vmatprep.subr.mxu0 0.0
          %1735 = vmatpush1.msra.mxu0 0.0
          %1736 = vmatprep.subr.mxu0 0.0
          %1737 = vmatpush1.msra.mxu0 0.0
          %1738 = vmatprep.subr.mxu0 0.0
          %1739 = vmatpush1.msra.mxu0 0.0
          %1740 = vmatprep.subr.mxu0 0.0
          %1741 = vmatpush1.msra.mxu0 0.0
          %1742 = vmatprep.subr.mxu0 0.0
          %1743 = vmatpush1.msra.mxu0 0.0
          %1744 = vmatprep.subr.mxu0 0.0
          %1745 = vmatpush1.msra.mxu0 0.0
          %1746 = vmatprep.subr.mxu0 0.0
          %1747 = vmatpush1.msra.mxu0 0.0
          %1748 = vmatprep.subr.mxu0 0.0
          %1749 = vmatpush1.msra.mxu0 0.0
          %1750 = vmatprep.subr.mxu0 0.0
          %1751 = vmatpush1.msra.mxu0 0.0
          %1752 = vmatprep.subr.mxu0 0.0
          %1753 = vmatpush1.msra.mxu0 0.0
          %1754 = vmatprep.subr.mxu0 0.0
          %1755 = vmatpush1.msra.mxu0 0.0
          %1756 = vmatprep.subr.mxu0 0.0
          %1757 = vmatpush1.msra.mxu0 0.0
          %1758 = vmatprep.subr.mxu0 0.0
          %1759 = vmatpush1.msra.mxu0 0.0
          %1760 = vmatprep.mubr.f32.mxu0 0.0
          %1761 = vmatmul.mubr.f32.gmra.mrb[0].mxu0 %v1694
          %v1762 = vpop.f32.mrb[0].mxu0
          %v1763 = vadd.f32 0.0, %v1762
          %v1764 = vpop.f32.mrb[0].mxu0
          %1765 = vdwg.mxu0
          %v1766 = vadd.f32 %v1690, %v1763
          %v1767 = vxor.u32 %v1766, 2147483648
          %v1768 = vmul.f32 %v1767, 1.442695
          %v1769 = vpow.pop %v1768
          %v1770 = vadd.f32 %v1769, 1.0
          %v1771 = vrcp.pop %v1770
          %v1772 = vmul.f32 1.0, %v1771
          %v1773 = vtanh.pop %v1766
          %v1774 = vmul.f32 %v1772, %v1682
          %1776 = vrot.lane.b32.xlu0 %v1773, 64
          %v1777 = vpop.permute.xlu0 %1776
          %v1779 = vmul.f32 %v1772, %v1777
          %1781 = vrot.lane.b32.xlu0 %v1779, 32
          %v1782 = vpop.permute.xlu0 %1781
          %v1784 = vadd.f32 %v1774, %v1782
          %v1785 = vtanh.pop %v1784
          %1787 = vrot.lane.b32.xlu0 %v1785, 64
          %v1788 = vpop.permute.xlu0 %1787
          %v1790 = vmul.f32 %v1772, %v1788
          %s1791 = scalar_lea.vmem [#allocation2], 96
          %v1792 = vld [vmem:[%s1791] sm:$0xff]
          %1794 = vrot.lane.b32.xlu0 %v1790, 32
          %v1795 = vpop.permute.xlu0 %1794
          %v1796 = vsel %vm570, %v1795, 0
          %1798 = vmatprep.subr.mxu0 0.0
          %1799 = vmatpush1.msra.mxu0 %v565
          %1800 = vmatprep.subr.mxu0 0.0
          %1801 = vmatpush1.msra.mxu0 %v566
          %1802 = vmatprep.subr.mxu0 0.0
          %1803 = vmatpush1.msra.mxu0 %v567
          %1804 = vmatprep.subr.mxu0 0.0
          %1805 = vmatpush1.msra.mxu0 %v568
          %1806 = vmatprep.subr.mxu0 0.0
          %1807 = vmatpush1.msra.mxu0 0.0
          %1808 = vmatprep.subr.mxu0 0.0
          %1809 = vmatpush1.msra.mxu0 0.0
          %1810 = vmatprep.subr.mxu0 0.0
          %1811 = vmatpush1.msra.mxu0 0.0
          %1812 = vmatprep.subr.mxu0 0.0
          %1813 = vmatpush1.msra.mxu0 0.0
          %1814 = vmatprep.subr.mxu0 0.0
          %1815 = vmatpush1.msra.mxu0 0.0
          %1816 = vmatprep.subr.mxu0 0.0
          %1817 = vmatpush1.msra.mxu0 0.0
          %1818 = vmatprep.subr.mxu0 0.0
          %1819 = vmatpush1.msra.mxu0 0.0
          %1820 = vmatprep.subr.mxu0 0.0
          %1821 = vmatpush1.msra.mxu0 0.0
          %1822 = vmatprep.subr.mxu0 0.0
          %1823 = vmatpush1.msra.mxu0 0.0
          %1824 = vmatprep.subr.mxu0 0.0
          %1825 = vmatpush1.msra.mxu0 0.0
          %1826 = vmatprep.subr.mxu0 0.0
          %1827 = vmatpush1.msra.mxu0 0.0
          %1828 = vmatprep.subr.mxu0 0.0
          %1829 = vmatpush1.msra.mxu0 0.0
          %1830 = vmatprep.subr.mxu0 0.0
          %1831 = vmatpush1.msra.mxu0 0.0
          %1832 = vmatprep.subr.mxu0 0.0
          %1833 = vmatpush1.msra.mxu0 0.0
          %1834 = vmatprep.subr.mxu0 0.0
          %1835 = vmatpush1.msra.mxu0 0.0
          %1836 = vmatprep.subr.mxu0 0.0
          %1837 = vmatpush1.msra.mxu0 0.0
          %1838 = vmatprep.subr.mxu0 0.0
          %1839 = vmatpush1.msra.mxu0 0.0
          %1840 = vmatprep.subr.mxu0 0.0
          %1841 = vmatpush1.msra.mxu0 0.0
          %1842 = vmatprep.subr.mxu0 0.0
          %1843 = vmatpush1.msra.mxu0 0.0
          %1844 = vmatprep.subr.mxu0 0.0
          %1845 = vmatpush1.msra.mxu0 0.0
          %1846 = vmatprep.subr.mxu0 0.0
          %1847 = vmatpush1.msra.mxu0 0.0
          %1848 = vmatprep.subr.mxu0 0.0
          %1849 = vmatpush1.msra.mxu0 0.0
          %1850 = vmatprep.subr.mxu0 0.0
          %1851 = vmatpush1.msra.mxu0 0.0
          %1852 = vmatprep.subr.mxu0 0.0
          %1853 = vmatpush1.msra.mxu0 0.0
          %1854 = vmatprep.subr.mxu0 0.0
          %1855 = vmatpush1.msra.mxu0 0.0
          %1856 = vmatprep.subr.mxu0 0.0
          %1857 = vmatpush1.msra.mxu0 0.0
          %1858 = vmatprep.subr.mxu0 0.0
          %1859 = vmatpush1.msra.mxu0 0.0
          %1860 = vmatprep.subr.mxu0 0.0
          %1861 = vmatpush1.msra.mxu0 0.0
          %1862 = vmatprep.mubr.f32.mxu0 0.0
          %1863 = vmatmul.mubr.f32.gmra.mrb[0].mxu0 %v1796
          %v1864 = vpop.f32.mrb[0].mxu0
          %v1865 = vadd.f32 0.0, %v1864
          %v1866 = vpop.f32.mrb[0].mxu0
          %1867 = vdwg.mxu0
          %v1868 = vadd.f32 %v1792, %v1865
          %v1869 = vxor.u32 %v1868, 2147483648
          %v1870 = vmul.f32 %v1869, 1.442695
          %v1871 = vpow.pop %v1870
          %v1872 = vadd.f32 %v1871, 1.0
          %v1873 = vrcp.pop %v1872
          %v1874 = vmul.f32 1.0, %v1873
          %v1875 = vtanh.pop %v1868
          %v1876 = vmul.f32 %v1874, %v1784
          %1878 = vrot.lane.b32.xlu0 %v1875, 64
          %v1879 = vpop.permute.xlu0 %1878
          %v1881 = vmul.f32 %v1874, %v1879
          %1883 = vrot.lane.b32.xlu0 %v1881, 32
          %v1884 = vpop.permute.xlu0 %1883
          %v1886 = vadd.f32 %v1876, %v1884
          %v1887 = vtanh.pop %v1886
          %1889 = vrot.lane.b32.xlu0 %v1887, 64
          %v1890 = vpop.permute.xlu0 %1889
          %v1892 = vmul.f32 %v1874, %v1890
          %s1893 = scalar_lea.vmem [#allocation2], 104
          %v1894 = vld [vmem:[%s1893] sm:$0xff]
          %1896 = vrot.lane.b32.xlu0 %v1892, 32
          %v1897 = vpop.permute.xlu0 %1896
          %v1898 = vsel %vm570, %v1897, 0
          %1900 = vmatprep.subr.mxu0 0.0
          %1901 = vmatpush1.msra.mxu0 %v565
          %1902 = vmatprep.subr.mxu0 0.0
          %1903 = vmatpush1.msra.mxu0 %v566
          %1904 = vmatprep.subr.mxu0 0.0
          %1905 = vmatpush1.msra.mxu0 %v567
          %1906 = vmatprep.subr.mxu0 0.0
          %1907 = vmatpush1.msra.mxu0 %v568
          %1908 = vmatprep.subr.mxu0 0.0
          %1909 = vmatpush1.msra.mxu0 0.0
          %1910 = vmatprep.subr.mxu0 0.0
          %1911 = vmatpush1.msra.mxu0 0.0
          %1912 = vmatprep.subr.mxu0 0.0
          %1913 = vmatpush1.msra.mxu0 0.0
          %1914 = vmatprep.subr.mxu0 0.0
          %1915 = vmatpush1.msra.mxu0 0.0
          %1916 = vmatprep.subr.mxu0 0.0
          %1917 = vmatpush1.msra.mxu0 0.0
          %1918 = vmatprep.subr.mxu0 0.0
          %1919 = vmatpush1.msra.mxu0 0.0
          %1920 = vmatprep.subr.mxu0 0.0
          %1921 = vmatpush1.msra.mxu0 0.0
          %1922 = vmatprep.subr.mxu0 0.0
          %1923 = vmatpush1.msra.mxu0 0.0
          %1924 = vmatprep.subr.mxu0 0.0
          %1925 = vmatpush1.msra.mxu0 0.0
          %1926 = vmatprep.subr.mxu0 0.0
          %1927 = vmatpush1.msra.mxu0 0.0
          %1928 = vmatprep.subr.mxu0 0.0
          %1929 = vmatpush1.msra.mxu0 0.0
          %1930 = vmatprep.subr.mxu0 0.0
          %1931 = vmatpush1.msra.mxu0 0.0
          %1932 = vmatprep.subr.mxu0 0.0
          %1933 = vmatpush1.msra.mxu0 0.0
          %1934 = vmatprep.subr.mxu0 0.0
          %1935 = vmatpush1.msra.mxu0 0.0
          %1936 = vmatprep.subr.mxu0 0.0
          %1937 = vmatpush1.msra.mxu0 0.0
          %1938 = vmatprep.subr.mxu0 0.0
          %1939 = vmatpush1.msra.mxu0 0.0
          %1940 = vmatprep.subr.mxu0 0.0
          %1941 = vmatpush1.msra.mxu0 0.0
          %1942 = vmatprep.subr.mxu0 0.0
          %1943 = vmatpush1.msra.mxu0 0.0
          %1944 = vmatprep.subr.mxu0 0.0
          %1945 = vmatpush1.msra.mxu0 0.0
          %1946 = vmatprep.subr.mxu0 0.0
          %1947 = vmatpush1.msra.mxu0 0.0
          %1948 = vmatprep.subr.mxu0 0.0
          %1949 = vmatpush1.msra.mxu0 0.0
          %1950 = vmatprep.subr.mxu0 0.0
          %1951 = vmatpush1.msra.mxu0 0.0
          %1952 = vmatprep.subr.mxu0 0.0
          %1953 = vmatpush1.msra.mxu0 0.0
          %1954 = vmatprep.subr.mxu0 0.0
          %1955 = vmatpush1.msra.mxu0 0.0
          %1956 = vmatprep.subr.mxu0 0.0
          %1957 = vmatpush1.msra.mxu0 0.0
          %1958 = vmatprep.subr.mxu0 0.0
          %1959 = vmatpush1.msra.mxu0 0.0
          %1960 = vmatprep.subr.mxu0 0.0
          %1961 = vmatpush1.msra.mxu0 0.0
          %1962 = vmatprep.subr.mxu0 0.0
          %1963 = vmatpush1.msra.mxu0 0.0
          %1964 = vmatprep.mubr.f32.mxu0 0.0
          %1965 = vmatmul.mubr.f32.gmra.mrb[0].mxu0 %v1898
          %v1966 = vpop.f32.mrb[0].mxu0
          %v1967 = vadd.f32 0.0, %v1966
          %v1968 = vpop.f32.mrb[0].mxu0
          %1969 = vdwg.mxu0
          %v1970 = vadd.f32 %v1894, %v1967
          %v1971 = vxor.u32 %v1970, 2147483648
          %v1972 = vmul.f32 %v1971, 1.442695
          %v1973 = vpow.pop %v1972
          %v1974 = vadd.f32 %v1973, 1.0
          %v1975 = vrcp.pop %v1974
          %v1976 = vmul.f32 1.0, %v1975
          %v1977 = vtanh.pop %v1970
          %v1978 = vmul.f32 %v1976, %v1886
          %1980 = vrot.lane.b32.xlu0 %v1977, 64
          %v1981 = vpop.permute.xlu0 %1980
          %v1983 = vmul.f32 %v1976, %v1981
          %1985 = vrot.lane.b32.xlu0 %v1983, 32
          %v1986 = vpop.permute.xlu0 %1985
          %v1988 = vadd.f32 %v1978, %v1986
          %v1989 = vtanh.pop %v1988
          %1991 = vrot.lane.b32.xlu0 %v1989, 64
          %v1992 = vpop.permute.xlu0 %1991
          %v1994 = vmul.f32 %v1976, %v1992
          %s1995 = scalar_lea.vmem [#allocation2], 112
          %v1996 = vld [vmem:[%s1995] sm:$0xff]
          %1998 = vrot.lane.b32.xlu0 %v1994, 32
          %v1999 = vpop.permute.xlu0 %1998
          %v2000 = vsel %vm570, %v1999, 0
          %2002 = vmatprep.subr.mxu0 0.0
          %2003 = vmatpush1.msra.mxu0 %v565
          %2004 = vmatprep.subr.mxu0 0.0
          %2005 = vmatpush1.msra.mxu0 %v566
          %2006 = vmatprep.subr.mxu0 0.0
          %2007 = vmatpush1.msra.mxu0 %v567
          %2008 = vmatprep.subr.mxu0 0.0
          %2009 = vmatpush1.msra.mxu0 %v568
          %2010 = vmatprep.subr.mxu0 0.0
          %2011 = vmatpush1.msra.mxu0 0.0
          %2012 = vmatprep.subr.mxu0 0.0
          %2013 = vmatpush1.msra.mxu0 0.0
          %2014 = vmatprep.subr.mxu0 0.0
          %2015 = vmatpush1.msra.mxu0 0.0
          %2016 = vmatprep.subr.mxu0 0.0
          %2017 = vmatpush1.msra.mxu0 0.0
          %2018 = vmatprep.subr.mxu0 0.0
          %2019 = vmatpush1.msra.mxu0 0.0
          %2020 = vmatprep.subr.mxu0 0.0
          %2021 = vmatpush1.msra.mxu0 0.0
          %2022 = vmatprep.subr.mxu0 0.0
          %2023 = vmatpush1.msra.mxu0 0.0
          %2024 = vmatprep.subr.mxu0 0.0
          %2025 = vmatpush1.msra.mxu0 0.0
          %2026 = vmatprep.subr.mxu0 0.0
          %2027 = vmatpush1.msra.mxu0 0.0
          %2028 = vmatprep.subr.mxu0 0.0
          %2029 = vmatpush1.msra.mxu0 0.0
          %2030 = vmatprep.subr.mxu0 0.0
          %2031 = vmatpush1.msra.mxu0 0.0
          %2032 = vmatprep.subr.mxu0 0.0
          %2033 = vmatpush1.msra.mxu0 0.0
          %2034 = vmatprep.subr.mxu0 0.0
          %2035 = vmatpush1.msra.mxu0 0.0
          %2036 = vmatprep.subr.mxu0 0.0
          %2037 = vmatpush1.msra.mxu0 0.0
          %2038 = vmatprep.subr.mxu0 0.0
          %2039 = vmatpush1.msra.mxu0 0.0
          %2040 = vmatprep.subr.mxu0 0.0
          %2041 = vmatpush1.msra.mxu0 0.0
          %2042 = vmatprep.subr.mxu0 0.0
          %2043 = vmatpush1.msra.mxu0 0.0
          %2044 = vmatprep.subr.mxu0 0.0
          %2045 = vmatpush1.msra.mxu0 0.0
          %2046 = vmatprep.subr.mxu0 0.0
          %2047 = vmatpush1.msra.mxu0 0.0
          %2048 = vmatprep.subr.mxu0 0.0
          %2049 = vmatpush1.msra.mxu0 0.0
          %2050 = vmatprep.subr.mxu0 0.0
          %2051 = vmatpush1.msra.mxu0 0.0
          %2052 = vmatprep.subr.mxu0 0.0
          %2053 = vmatpush1.msra.mxu0 0.0
          %2054 = vmatprep.subr.mxu0 0.0
          %2055 = vmatpush1.msra.mxu0 0.0
          %2056 = vmatprep.subr.mxu0 0.0
          %2057 = vmatpush1.msra.mxu0 0.0
          %2058 = vmatprep.subr.mxu0 0.0
          %2059 = vmatpush1.msra.mxu0 0.0
          %2060 = vmatprep.subr.mxu0 0.0
          %2061 = vmatpush1.msra.mxu0 0.0
          %2062 = vmatprep.subr.mxu0 0.0
          %2063 = vmatpush1.msra.mxu0 0.0
          %2064 = vmatprep.subr.mxu0 0.0
          %2065 = vmatpush1.msra.mxu0 0.0
          %2066 = vmatprep.mubr.f32.mxu0 0.0
          %2067 = vmatmul.mubr.f32.gmra.mrb[0].mxu0 %v2000
          %v2068 = vpop.f32.mrb[0].mxu0
          %v2069 = vadd.f32 0.0, %v2068
          %v2070 = vpop.f32.mrb[0].mxu0
          %2071 = vdwg.mxu0
          %v2072 = vadd.f32 %v1996, %v2069
          %v2073 = vxor.u32 %v2072, 2147483648
          %v2074 = vmul.f32 %v2073, 1.442695
          %v2075 = vpow.pop %v2074
          %v2076 = vadd.f32 %v2075, 1.0
          %v2077 = vrcp.pop %v2076
          %v2078 = vmul.f32 1.0, %v2077
          %v2079 = vtanh.pop %v2072
          %v2080 = vmul.f32 %v2078, %v1988
          %2082 = vrot.lane.b32.xlu0 %v2079, 64
          %v2083 = vpop.permute.xlu0 %2082
          %v2085 = vmul.f32 %v2078, %v2083
          %2087 = vrot.lane.b32.xlu0 %v2085, 32
          %v2088 = vpop.permute.xlu0 %2087
          %v2090 = vadd.f32 %v2080, %v2088
          %v2091 = vtanh.pop %v2090
          %2093 = vrot.lane.b32.xlu0 %v2091, 64
          %v2094 = vpop.permute.xlu0 %2093
          %v2096 = vmul.f32 %v2078, %v2094
          %v2097 = vld [vmem:[#allocation9] sm:$0xff]
          %v2098 = vld [vmem:[#allocation9 + $0x8] sm:$0xff]
          %v2099 = vld [vmem:[#allocation9 + $0x10] sm:$0xff]
          %v2100 = vld [vmem:[#allocation9 + $0x18] sm:$0xff]
          %v2101 = vld [vmem:[%s5] sm:$0x1]
          %v2103 = vlaneseq
          %v2104 = vshrl.u32 %v2103, 7
          %v2105 = vsub.s32 0, %v2104
          %v2106 = vrot.slane %v2101, %v2105
          %2109 = vrot.lane.b32.xlu0 %v2096, 32
          %v2110 = vpop.permute.xlu0 %2109
          %v2111 = vsel %vm570, %v2110, 0
          %2113 = vmatprep.subr.mxu0 0.0
          %2114 = vmatpush1.msra.mxu0 %v2097
          %2115 = vmatprep.subr.mxu0 0.0
          %2116 = vmatpush1.msra.mxu0 %v2098
          %2117 = vmatprep.subr.mxu0 0.0
          %2118 = vmatpush1.msra.mxu0 %v2099
          %2119 = vmatprep.subr.mxu0 0.0
          %2120 = vmatpush1.msra.mxu0 %v2100
          %2121 = vmatprep.subr.mxu0 0.0
          %2122 = vmatpush1.msra.mxu0 0.0
          %2123 = vmatprep.subr.mxu0 0.0
          %2124 = vmatpush1.msra.mxu0 0.0
          %2125 = vmatprep.subr.mxu0 0.0
          %2126 = vmatpush1.msra.mxu0 0.0
          %2127 = vmatprep.subr.mxu0 0.0
          %2128 = vmatpush1.msra.mxu0 0.0
          %2129 = vmatprep.subr.mxu0 0.0
          %2130 = vmatpush1.msra.mxu0 0.0
          %2131 = vmatprep.subr.mxu0 0.0
          %2132 = vmatpush1.msra.mxu0 0.0
          %2133 = vmatprep.subr.mxu0 0.0
          %2134 = vmatpush1.msra.mxu0 0.0
          %2135 = vmatprep.subr.mxu0 0.0
          %2136 = vmatpush1.msra.mxu0 0.0
          %2137 = vmatprep.subr.mxu0 0.0
          %2138 = vmatpush1.msra.mxu0 0.0
          %2139 = vmatprep.subr.mxu0 0.0
          %2140 = vmatpush1.msra.mxu0 0.0
          %2141 = vmatprep.subr.mxu0 0.0
          %2142 = vmatpush1.msra.mxu0 0.0
          %2143 = vmatprep.subr.mxu0 0.0
          %2144 = vmatpush1.msra.mxu0 0.0
          %2145 = vmatprep.subr.mxu0 0.0
          %2146 = vmatpush1.msra.mxu0 0.0
          %2147 = vmatprep.subr.mxu0 0.0
          %2148 = vmatpush1.msra.mxu0 0.0
          %2149 = vmatprep.subr.mxu0 0.0
          %2150 = vmatpush1.msra.mxu0 0.0
          %2151 = vmatprep.subr.mxu0 0.0
          %2152 = vmatpush1.msra.mxu0 0.0
          %2153 = vmatprep.subr.mxu0 0.0
          %2154 = vmatpush1.msra.mxu0 0.0
          %2155 = vmatprep.subr.mxu0 0.0
          %2156 = vmatpush1.msra.mxu0 0.0
          %2157 = vmatprep.subr.mxu0 0.0
          %2158 = vmatpush1.msra.mxu0 0.0
          %2159 = vmatprep.subr.mxu0 0.0
          %2160 = vmatpush1.msra.mxu0 0.0
          %2161 = vmatprep.subr.mxu0 0.0
          %2162 = vmatpush1.msra.mxu0 0.0
          %2163 = vmatprep.subr.mxu0 0.0
          %2164 = vmatpush1.msra.mxu0 0.0
          %2165 = vmatprep.subr.mxu0 0.0
          %2166 = vmatpush1.msra.mxu0 0.0
          %2167 = vmatprep.subr.mxu0 0.0
          %2168 = vmatpush1.msra.mxu0 0.0
          %2169 = vmatprep.subr.mxu0 0.0
          %2170 = vmatpush1.msra.mxu0 0.0
          %2171 = vmatprep.subr.mxu0 0.0
          %2172 = vmatpush1.msra.mxu0 0.0
          %2173 = vmatprep.subr.mxu0 0.0
          %2174 = vmatpush1.msra.mxu0 0.0
          %2175 = vmatprep.subr.mxu0 0.0
          %2176 = vmatpush1.msra.mxu0 0.0
          %2177 = vmatprep.mubr.f32.mxu0 0.0
          %2178 = vmatmul.mubr.f32.gmra.mrb[0].mxu0 %v2111
          %v2179 = vpop.f32.mrb[0].mxu0
          %v2180 = vadd.f32 %v2106, %v2179
          %v2181 = vpop.f32.mrb[0].mxu0
          %2182 = vdwg.mxu0
          %2183 = vst [vmem:[#allocation11] sm:$0xff] %v2180
        $region64: #{tpu_custom_call.1} parent=43 // pred_fallthru
          _
        // Predicated region
        $region65: #{tpu_custom_call.1} parent=43 // pred_check
          %p2184 = pneg %p167
        $region66: #{tpu_custom_call.1} parent=43 // pred_check_branch
          %2186 = sbr.rel (%p2184) target = $region68
        $region67: #{tpu_custom_call.1} parent=43 // pred_region
          %s2188 = ssub.s32 128, 128
          %2189 = vsyncadd [#allocation5], %s2188
          %s2191 = sshll.u32 [#allocation11], 4
          %s2192 = int_to_ptr.vmem [resolvable:$true] %s2191
          %2194 = dma.vmem_to_hbm [thread:$0]  %s2192, 128, %s6, [#allocation5]
        $region68: #{tpu_custom_call.1} parent=43 // pred_fallthru
          _
        // Predicated region
        $region69: #{tpu_custom_call.1} parent=43 // pred_check
          %p2195 = pneg %p167
        $region70: #{tpu_custom_call.1} parent=43 // pred_check_branch
          %2197 = sbr.rel (%p2195) target = $region72
        $region71: #{tpu_custom_call.1} parent=43 // pred_region
          %2198 = dma.done [#allocation5], 128
        $region72: #{tpu_custom_call.1} parent=43 // pred_fallthru
          _
      $region44: #{tpu_custom_call.1} parent=5 // pred_fallthru
        _
      %p2199 = scmp.le.s32.totalorder 2, %s18
      // Predicated region
      $region73: #{tpu_custom_call.1} parent=5 // pred_check
        %p2200 = pneg %p2199
      $region74: #{tpu_custom_call.1} parent=5 // pred_check_branch
        %2202 = sbr.rel (%p2200) target = $region76
      $region75: #{tpu_custom_call.1} parent=5 // pred_region
        %s2203 = ssub.s32 %s18, 2
      $region76: #{tpu_custom_call.1} parent=5 // pred_fallthru
        _
    $region6: #{tpu_custom_call.1} parent=1 // loop_footer
      %s22 = sadd.s32 1, %s18
    $region7: #{tpu_custom_call.1} parent=1 // loop_footer_branch
      %17 = sbr.rel target = $region3
    $region8: #{tpu_custom_call.1} parent=1 // loop_exit
      _
    %2204 = vsyncpa [#allocation4], 1
    %s2205 = scalar_lea.sflag [#allocation4], 1
    %2206 = vsyncpa %s2205, 1
    %2207 = vsyncpa [#allocation7], 1
    %2208 = vsyncpa [#allocation10], 1
    %2209 = vsyncpa [#allocation5], 1
    %s2210 = scalar_lea.sflag [#allocation5], 1
    %2211 = vsyncpa %s2210, 1

</llo_original>
